<compile_context>
chip_gen: v7x
topology: tpu7x:2x2x1
jax: 0.10.0
libtpu: 0.0.40
codegen_flags: <defaults>
</compile_context>

<pallas_src>
import functools
import typing as tp

import jax
import jax.numpy as jnp
from jax import lax
from jax.experimental import pallas as pl
from jax.experimental.pallas import tpu as pltpu


def _round_up(x: int, m: int) -> int:
    return ((x + m - 1) // m) * m


# ----------------------------------------------------------------------------
# Pallas kernel: RVQ quantization + output projection + empty-row masking
# ----------------------------------------------------------------------------
def _joint_embed_kernel(embed_ref, cb_ref, csq_ref, w_ref, b_ref, keep_ref,
                        out_ref, *, n_q: int, quantize: bool):
    # embed_ref : [TB, D]          batch tile of latent embeddings (native dtype)
    # cb_ref    : [n_q, bins, D]   RVQ codebooks (resident, constant index_map)
    # csq_ref   : [n_q, 1, bins]   precomputed ||c||^2 per codeword, f32 (resident)
    # w_ref     : [D, O]           output_proj weight, x @ W layout (resident)
    # b_ref     : [1, O]           output_proj bias, f32 (resident)
    # keep_ref  : [TB, 1]          1.0 keep / 0.0 empty (f32)
    # out_ref   : [TB, O]          projected + masked embedding
    x = embed_ref[...]                                        # [TB, D] native dtype
    cb_dtype = cb_ref.dtype
    w_dtype = w_ref.dtype

    if quantize:
        # Residual/accumulator bookkeeping in f32 for accuracy; the big matmuls run in
        # the codebook/weight dtype (bf16-rate MXU when params are bf16).
        resid = x.astype(jnp.float32)                         # [TB, D]
        quant = jnp.zeros_like(resid)                         # [TB, D]
        for i in range(n_q):                                  # n_q is small & static
            cb = cb_ref[i]                                    # [bins, D] native dtype
            bins = cb.shape[0]
            # squared distance up to the per-row constant ||r||^2:  ||c||^2 - 2 r.c
            dots = lax.dot_general(resid.astype(cb_dtype), cb,
                                   (((1,), (1,)), ((), ())),
                                   preferred_element_type=jnp.float32)   # [TB, bins]
            dist = csq_ref[i] - 2.0 * dots                                # [TB, bins] f32
            # argmin with lowest-index tie-break using only min-reductions
            min_d = jnp.min(dist, axis=-1, keepdims=True)                 # [TB, 1]
            iota = lax.broadcasted_iota(jnp.int32, dist.shape, 1)         # [TB, bins]
            sel = jnp.min(jnp.where(dist <= min_d, iota, bins),
                          axis=-1, keepdims=True)                         # [TB, 1]
            onehot = (iota == sel).astype(cb_dtype)                       # [TB, bins]
            # gather selected codewords via MXU one-hot matmul (exact: 0/1 weights)
            q_i = jnp.dot(onehot, cb, preferred_element_type=jnp.float32)  # [TB, D] f32
            quant = quant + q_i
            resid = resid - q_i
    else:
        quant = x.astype(jnp.float32)

    proj = jnp.dot(quant.astype(w_dtype), w_ref[...],
                   preferred_element_type=jnp.float32) + b_ref[...]       # [TB, O] f32
    out_ref[...] = (proj * keep_ref[...]).astype(out_ref.dtype)


def joint_embedding_conditioner_forward(embed: jax.Array,
                                        codebooks: jax.Array,
                                        w_proj: jax.Array,
                                        b_proj: jax.Array,
                                        empty_mask: jax.Array,
                                        *, quantize: bool = True,
                                        tile_b: int = 128
                                        ) -> tp.Tuple[jax.Array, jax.Array]:
    """Fused forward.

    embed      : [B, D]          latent embedding from _get_embed (external model)
    codebooks  : [n_q, bins, D]  RVQ codebooks (f32 or bf16)
    w_proj     : [D, O]          output_proj weight (already transposed for x @ W)
    b_proj     : [O]             output_proj bias
    empty_mask : [B]             1.0 for "empty" rows (torch's empty_idx), else 0.0
    returns (out_embed [B, 1, O], mask [B, 1]) matching ConditionType.
    """
    B, D = embed.shape
    n_q, bins, D2 = codebooks.shape
    assert D2 == D
    O = w_proj.shape[1]

    # Batch tiling: clamp the tile for tiny batches, keep it a sublane multiple,
    # pad B so the grid divides evenly.  (For v7x keep B large enough that
    # B/tile_b >= 2 so both TensorCores get work.)
    tile_b = _round_up(max(8, min(int(tile_b), _round_up(B, 8))), 8)
    Bp = _round_up(B, tile_b)

    keep = (1.0 - empty_mask.astype(jnp.float32)).reshape(B, 1)   # mask computed outside
    embed_p = embed if Bp == B else jnp.pad(embed, ((0, Bp - B), (0, 0)))
    keep_p = keep if Bp == B else jnp.pad(keep, ((0, Bp - B), (0, 0)))

    # Hoisted per-codeword squared norms: constant across the whole batch.
    c_sq = jnp.sum(jnp.square(codebooks.astype(jnp.float32)),
                   axis=-1).reshape(n_q, 1, bins)
    bias_row = b_proj.reshape(1, O).astype(jnp.float32)

    # Explicit VMEM budget: resident weights (double-buffered by Pallas) + in/out tiles.
    # TODO(synk): for very large codebooks (e.g. n_q=12, bins=1024, D=512) the resident
    # [n_q,bins,D] block exceeds v7x's 64 MiB VMEM; store codebooks in bf16 and/or move
    # the RVQ loop onto a (batch, stage) grid (or manual make_async_copy double-buffering
    # of one [bins, D] stage at a time) instead of keeping all stages resident.
    def _nbytes(a):
        return int(a.size) * int(a.dtype.itemsize)
    resident_bytes = (_nbytes(codebooks) + _nbytes(c_sq)
                      + _nbytes(w_proj) + _nbytes(bias_row))
    tile_bytes = (tile_b * D * int(embed.dtype.itemsize)      # embed tile
                  + tile_b * 4                                # keep tile
                  + tile_b * O * int(embed.dtype.itemsize))   # out tile
    vmem_limit = int(min(max(2 * resident_bytes + 4 * tile_bytes + (8 << 20),
                             32 << 20), 100 << 20))

    kernel = functools.partial(_joint_embed_kernel, n_q=n_q, quantize=quantize)

    out = pl.pallas_call(
        kernel,
        out_shape=jax.ShapeDtypeStruct((Bp, O), embed.dtype),
        grid_spec=pltpu.PrefetchScalarGridSpec(
            num_scalar_prefetch=0,
            grid=(Bp // tile_b,),
            in_specs=[
                pl.BlockSpec((tile_b, D), lambda i: (i, 0)),         # embed tile
                pl.BlockSpec((n_q, bins, D), lambda i: (0, 0, 0)),   # codebooks (resident)
                pl.BlockSpec((n_q, 1, bins), lambda i: (0, 0, 0)),   # ||c||^2  (resident)
                pl.BlockSpec((D, O), lambda i: (0, 0)),              # proj weight (resident)
                pl.BlockSpec((1, O), lambda i: (0, 0)),              # proj bias (resident)
                pl.BlockSpec((tile_b, 1), lambda i: (i, 0)),         # keep tile
            ],
            out_specs=pl.BlockSpec((tile_b, O), lambda i: (i, 0)),   # lane-dense output
        ),
        compiler_params=pltpu.CompilerParams(
            dimension_semantics=("parallel",),   # batch tiles shard across TCs on v7x
            vmem_limit_bytes=vmem_limit),
    )(embed_p, codebooks, c_sq, w_proj, bias_row, keep_p)

    # torch: out_embed.view(-1, 1, output_dim); mask shape [B, 1]
    return out[:B].reshape(B, 1, O), keep


# ----------------------------------------------------------------------------
# Thin module-style wrapper mirroring JointEmbeddingConditioner semantics.
# ----------------------------------------------------------------------------
class JointEmbeddingConditioner:
    """JAX/Pallas port of the tensor path of audiocraft's JointEmbeddingConditioner.

    _get_embed is abstract in the original (implemented by e.g. CLAP); here the
    precomputed latent embedding + empty mask are taken as inputs.
    """
    # TODO(synk): _get_embed (external CLAP/audio-text encoder) and TorchAutocast
    # have no Pallas equivalent; embeddings are supplied directly.
    # TODO(synk): RVQ training-time EMA codebook updates / commitment loss /
    # straight-through gradient are not implemented (forward numerics only).

    def __init__(self, codebooks, w_proj, b_proj, quantize: bool = True,
                 tile_b: int = 128):
        self.codebooks = codebooks
        self.w_proj = w_proj
        self.b_proj = b_proj
        self.quantize = quantize
        self.tile_b = tile_b

    def tokenize(self, x):
        return x

    def __call__(self, embed, empty_mask):
        return joint_embedding_conditioner_forward(
            embed, self.codebooks, self.w_proj, self.b_proj, empty_mask,
            quantize=self.quantize, tile_b=self.tile_b)


# ----------------------------------------------------------------------------
# Pure-JAX reference of the same forward math (for correctness check)
# ----------------------------------------------------------------------------
def _ref_forward(embed, codebooks, w, b, empty_mask):
    resid = embed.astype(jnp.float32)
    quant = jnp.zeros_like(resid)
    cbs = codebooks.astype(jnp.float32)
    for i in range(codebooks.shape[0]):
        cb = cbs[i]
        dist = jnp.sum((resid[:, None, :] - cb[None, :, :]) ** 2, axis=-1)
        idx = jnp.argmin(dist, axis=-1)
        q_i = cb[idx]
        quant, resid = quant + q_i, resid - q_i
    proj = jnp.dot(quant, w.astype(jnp.float32),
                   precision=lax.Precision.HIGHEST) + b.astype(jnp.float32)[None, :]
    keep = (1.0 - empty_mask)[:, None]
    return (proj * keep).reshape(-1, 1, w.shape[1]), keep


# ----------------------------------------------------------------------------
# Demo / smoke test
# ----------------------------------------------------------------------------
if __name__ == "__main__":
    key = jax.random.PRNGKey(0)
    B, D, O = 16, 128, 256       # batch, dim, output_dim (small smoke-test shapes)
    n_q, bins = 4, 256           # residual quantizer stages / codebook size

    k_e, k_c, k_w, k_b = jax.random.split(key, 4)
    embed = jax.random.normal(k_e, (B, D), jnp.float32)          # stand-in for _get_embed output
    codebooks = jax.random.normal(k_c, (n_q, bins, D), jnp.float32)
    w_proj = jax.random.normal(k_w, (D, O), jnp.float32) / jnp.sqrt(D)
    b_proj = 0.01 * jax.random.normal(k_b, (O,), jnp.float32)
    empty_mask = jnp.zeros((B,), jnp.float32).at[3].set(1.0)     # empty_idx == [3]

    conditioner = JointEmbeddingConditioner(codebooks, w_proj, b_proj, quantize=True)
    out, mask = conditioner(embed, empty_mask)
    jax.block_until_ready(out)
    jax.block_until_ready(mask)

    ref_out, ref_mask = _ref_forward(embed, codebooks, w_proj, b_proj, empty_mask)
    assert out.shape == (B, 1, O) and mask.shape == (B, 1)
    assert bool(jnp.allclose(out, ref_out, rtol=2e-2, atol=2e-2))
    assert bool(jnp.allclose(mask, ref_mask))
    assert bool(jnp.all(out[3] == 0.0))          # empty row fully zeroed
    assert float(mask[3, 0]) == 0.0

    print("KERNEL_OK")
</pallas_src>

<mosaic_0001>
module attributes {stable_mosaic.version = 11 : i64} {
  func.func @_joint_embed_kernel(%arg0: i32, %arg1: memref<16x128xf32, #tpu.memory_space<vmem>>, %arg2: memref<4x256x128xf32, #tpu.memory_space<vmem>>, %arg3: memref<4x1x256xf32, #tpu.memory_space<vmem>>, %arg4: memref<128x256xf32, #tpu.memory_space<vmem>>, %arg5: memref<1x256xf32, #tpu.memory_space<vmem>>, %arg6: memref<16x1xf32, #tpu.memory_space<vmem>>, %arg7: memref<16x256xf32, #tpu.memory_space<vmem>>) attributes {dimension_semantics = [#tpu.dimension_semantics<parallel>], iteration_bounds = array<i64: 1>, scalar_prefetch = 0 : i64, scratch_operands = 0 : i64, tpu.core_type = #tpu.core_type<tc>, window_params = [{transform_indices = @transform_0, window_bounds = array<i64: 16, 128>}, {pipeline_mode = #tpu.pipeline_mode<synchronous>, transform_indices = @transform_1, window_bounds = array<i64: 4, 256, 128>}, {pipeline_mode = #tpu.pipeline_mode<synchronous>, transform_indices = @transform_2, window_bounds = array<i64: 4, 1, 256>}, {pipeline_mode = #tpu.pipeline_mode<synchronous>, transform_indices = @transform_3, window_bounds = array<i64: 128, 256>}, {pipeline_mode = #tpu.pipeline_mode<synchronous>, transform_indices = @transform_4, window_bounds = array<i64: 1, 256>}, {transform_indices = @transform_5, window_bounds = array<i64: 16, 1>}, {transform_indices = @transform_6, window_bounds = array<i64: 16, 256>}]} {
    %c0 = arith.constant 0 : index
    %c0_0 = arith.constant 0 : index
    %0 = vector.load %arg1[%c0, %c0_0] : memref<16x128xf32, #tpu.memory_space<vmem>>, vector<16x128xf32>
    %cst = arith.constant 0.000000e+00 : f32
    %1 = vector.broadcast %cst : f32 to vector<16x128xf32>
    %c0_1 = arith.constant 0 : index
    %c0_2 = arith.constant 0 : index
    %c0_3 = arith.constant 0 : index
    %2 = vector.load %arg2[%c0_1, %c0_2, %c0_3] : memref<4x256x128xf32, #tpu.memory_space<vmem>>, vector<1x256x128xf32>
    %3 = vector.shape_cast %2 : vector<1x256x128xf32> to vector<256x128xf32>
    %cst_4 = arith.constant dense<0.000000e+00> : vector<16x256xf32>
    %4 = tpu.matmul %0, %3, %cst_4 {dimension_numbers = #tpu.dot_dimension_numbers<[1], [1], [0], [0], [0, 0, 1, 0], [], []>} : vector<16x128xf32>, vector<256x128xf32>, vector<16x256xf32> -> vector<16x256xf32>
    %c0_5 = arith.constant 0 : index
    %c0_6 = arith.constant 0 : index
    %c0_7 = arith.constant 0 : index
    %5 = vector.load %arg3[%c0_5, %c0_6, %c0_7] : memref<4x1x256xf32, #tpu.memory_space<vmem>>, vector<1x1x256xf32>
    %6 = vector.shape_cast %5 : vector<1x1x256xf32> to vector<1x256xf32>
    %cst_8 = arith.constant 2.000000e+00 : f32
    %7 = vector.broadcast %cst_8 : f32 to vector<16x256xf32>
    %8 = arith.mulf %7, %4 : vector<16x256xf32>
    %9 = vector.broadcast %6 : vector<1x256xf32> to vector<16x256xf32>
    %10 = arith.subf %9, %8 : vector<16x256xf32>
    %cst_9 = arith.constant dense<0x7F800000> : vector<16xf32>
    %11 = vector.multi_reduction <minimumf>, %10, %cst_9 [1] : vector<16x256xf32> to vector<16xf32>
    %12 = vector.shape_cast %11 : vector<16xf32> to vector<16x1xf32>
    %13 = tpu.iota {dimensions = array<i32: 1>} : vector<16x256xi32>
    %14 = vector.broadcast %12 : vector<16x1xf32> to vector<16x256xf32>
    %15 = arith.cmpf ole, %10, %14 : vector<16x256xf32>
    %c256_i32 = arith.constant 256 : i32
    %16 = vector.broadcast %c256_i32 : i32 to vector<16x256xi32>
    %17 = arith.select %15, %13, %16 : vector<16x256xi1>, vector<16x256xi32>
    %cst_10 = arith.constant dense<2147483647> : vector<16xi32>
    %18 = vector.multi_reduction <minsi>, %17, %cst_10 [1] : vector<16x256xi32> to vector<16xi32>
    %19 = vector.shape_cast %18 : vector<16xi32> to vector<16x1xi32>
    %20 = vector.broadcast %19 : vector<16x1xi32> to vector<16x256xi32>
    %21 = arith.cmpi eq, %13, %20 : vector<16x256xi32>
    %22 = arith.extui %21 : vector<16x256xi1> to vector<16x256xi32>
    %23 = arith.sitofp %22 : vector<16x256xi32> to vector<16x256xf32>
    %cst_11 = arith.constant dense<0.000000e+00> : vector<16x128xf32>
    %24 = tpu.matmul %23, %3, %cst_11 {dimension_numbers = #tpu.dot_dimension_numbers<[1], [0], [0], [1], [0, 0, 1, 1], [], []>} : vector<16x256xf32>, vector<256x128xf32>, vector<16x128xf32> -> vector<16x128xf32>
    %25 = arith.addf %1, %24 : vector<16x128xf32>
    %26 = arith.subf %0, %24 : vector<16x128xf32>
    %c1 = arith.constant 1 : index
    %c0_12 = arith.constant 0 : index
    %c0_13 = arith.constant 0 : index
    %27 = vector.load %arg2[%c1, %c0_12, %c0_13] : memref<4x256x128xf32, #tpu.memory_space<vmem>>, vector<1x256x128xf32>
    %28 = vector.shape_cast %27 : vector<1x256x128xf32> to vector<256x128xf32>
    %cst_14 = arith.constant dense<0.000000e+00> : vector<16x256xf32>
    %29 = tpu.matmul %26, %28, %cst_14 {dimension_numbers = #tpu.dot_dimension_numbers<[1], [1], [0], [0], [0, 0, 1, 0], [], []>} : vector<16x128xf32>, vector<256x128xf32>, vector<16x256xf32> -> vector<16x256xf32>
    %c1_15 = arith.constant 1 : index
    %c0_16 = arith.constant 0 : index
    %c0_17 = arith.constant 0 : index
    %30 = vector.load %arg3[%c1_15, %c0_16, %c0_17] : memref<4x1x256xf32, #tpu.memory_space<vmem>>, vector<1x1x256xf32>
    %31 = vector.shape_cast %30 : vector<1x1x256xf32> to vector<1x256xf32>
    %cst_18 = arith.constant 2.000000e+00 : f32
    %32 = vector.broadcast %cst_18 : f32 to vector<16x256xf32>
    %33 = arith.mulf %32, %29 : vector<16x256xf32>
    %34 = vector.broadcast %31 : vector<1x256xf32> to vector<16x256xf32>
    %35 = arith.subf %34, %33 : vector<16x256xf32>
    %cst_19 = arith.constant dense<0x7F800000> : vector<16xf32>
    %36 = vector.multi_reduction <minimumf>, %35, %cst_19 [1] : vector<16x256xf32> to vector<16xf32>
    %37 = vector.shape_cast %36 : vector<16xf32> to vector<16x1xf32>
    %38 = tpu.iota {dimensions = array<i32: 1>} : vector<16x256xi32>
    %39 = vector.broadcast %37 : vector<16x1xf32> to vector<16x256xf32>
    %40 = arith.cmpf ole, %35, %39 : vector<16x256xf32>
    %c256_i32_20 = arith.constant 256 : i32
    %41 = vector.broadcast %c256_i32_20 : i32 to vector<16x256xi32>
    %42 = arith.select %40, %38, %41 : vector<16x256xi1>, vector<16x256xi32>
    %cst_21 = arith.constant dense<2147483647> : vector<16xi32>
    %43 = vector.multi_reduction <minsi>, %42, %cst_21 [1] : vector<16x256xi32> to vector<16xi32>
    %44 = vector.shape_cast %43 : vector<16xi32> to vector<16x1xi32>
    %45 = vector.broadcast %44 : vector<16x1xi32> to vector<16x256xi32>
    %46 = arith.cmpi eq, %38, %45 : vector<16x256xi32>
    %47 = arith.extui %46 : vector<16x256xi1> to vector<16x256xi32>
    %48 = arith.sitofp %47 : vector<16x256xi32> to vector<16x256xf32>
    %cst_22 = arith.constant dense<0.000000e+00> : vector<16x128xf32>
    %49 = tpu.matmul %48, %28, %cst_22 {dimension_numbers = #tpu.dot_dimension_numbers<[1], [0], [0], [1], [0, 0, 1, 1], [], []>} : vector<16x256xf32>, vector<256x128xf32>, vector<16x128xf32> -> vector<16x128xf32>
    %50 = arith.addf %25, %49 : vector<16x128xf32>
    %51 = arith.subf %26, %49 : vector<16x128xf32>
    %c2 = arith.constant 2 : index
    %c0_23 = arith.constant 0 : index
    %c0_24 = arith.constant 0 : index
    %52 = vector.load %arg2[%c2, %c0_23, %c0_24] : memref<4x256x128xf32, #tpu.memory_space<vmem>>, vector<1x256x128xf32>
    %53 = vector.shape_cast %52 : vector<1x256x128xf32> to vector<256x128xf32>
    %cst_25 = arith.constant dense<0.000000e+00> : vector<16x256xf32>
    %54 = tpu.matmul %51, %53, %cst_25 {dimension_numbers = #tpu.dot_dimension_numbers<[1], [1], [0], [0], [0, 0, 1, 0], [], []>} : vector<16x128xf32>, vector<256x128xf32>, vector<16x256xf32> -> vector<16x256xf32>
    %c2_26 = arith.constant 2 : index
    %c0_27 = arith.constant 0 : index
    %c0_28 = arith.constant 0 : index
    %55 = vector.load %arg3[%c2_26, %c0_27, %c0_28] : memref<4x1x256xf32, #tpu.memory_space<vmem>>, vector<1x1x256xf32>
    %56 = vector.shape_cast %55 : vector<1x1x256xf32> to vector<1x256xf32>
    %cst_29 = arith.constant 2.000000e+00 : f32
    %57 = vector.broadcast %cst_29 : f32 to vector<16x256xf32>
    %58 = arith.mulf %57, %54 : vector<16x256xf32>
    %59 = vector.broadcast %56 : vector<1x256xf32> to vector<16x256xf32>
    %60 = arith.subf %59, %58 : vector<16x256xf32>
    %cst_30 = arith.constant dense<0x7F800000> : vector<16xf32>
    %61 = vector.multi_reduction <minimumf>, %60, %cst_30 [1] : vector<16x256xf32> to vector<16xf32>
    %62 = vector.shape_cast %61 : vector<16xf32> to vector<16x1xf32>
    %63 = tpu.iota {dimensions = array<i32: 1>} : vector<16x256xi32>
    %64 = vector.broadcast %62 : vector<16x1xf32> to vector<16x256xf32>
    %65 = arith.cmpf ole, %60, %64 : vector<16x256xf32>
    %c256_i32_31 = arith.constant 256 : i32
    %66 = vector.broadcast %c256_i32_31 : i32 to vector<16x256xi32>
    %67 = arith.select %65, %63, %66 : vector<16x256xi1>, vector<16x256xi32>
    %cst_32 = arith.constant dense<2147483647> : vector<16xi32>
    %68 = vector.multi_reduction <minsi>, %67, %cst_32 [1] : vector<16x256xi32> to vector<16xi32>
    %69 = vector.shape_cast %68 : vector<16xi32> to vector<16x1xi32>
    %70 = vector.broadcast %69 : vector<16x1xi32> to vector<16x256xi32>
    %71 = arith.cmpi eq, %63, %70 : vector<16x256xi32>
    %72 = arith.extui %71 : vector<16x256xi1> to vector<16x256xi32>
    %73 = arith.sitofp %72 : vector<16x256xi32> to vector<16x256xf32>
    %cst_33 = arith.constant dense<0.000000e+00> : vector<16x128xf32>
    %74 = tpu.matmul %73, %53, %cst_33 {dimension_numbers = #tpu.dot_dimension_numbers<[1], [0], [0], [1], [0, 0, 1, 1], [], []>} : vector<16x256xf32>, vector<256x128xf32>, vector<16x128xf32> -> vector<16x128xf32>
    %75 = arith.addf %50, %74 : vector<16x128xf32>
    %76 = arith.subf %51, %74 : vector<16x128xf32>
    %c3 = arith.constant 3 : index
    %c0_34 = arith.constant 0 : index
    %c0_35 = arith.constant 0 : index
    %77 = vector.load %arg2[%c3, %c0_34, %c0_35] : memref<4x256x128xf32, #tpu.memory_space<vmem>>, vector<1x256x128xf32>
    %78 = vector.shape_cast %77 : vector<1x256x128xf32> to vector<256x128xf32>
    %cst_36 = arith.constant dense<0.000000e+00> : vector<16x256xf32>
    %79 = tpu.matmul %76, %78, %cst_36 {dimension_numbers = #tpu.dot_dimension_numbers<[1], [1], [0], [0], [0, 0, 1, 0], [], []>} : vector<16x128xf32>, vector<256x128xf32>, vector<16x256xf32> -> vector<16x256xf32>
    %c3_37 = arith.constant 3 : index
    %c0_38 = arith.constant 0 : index
    %c0_39 = arith.constant 0 : index
    %80 = vector.load %arg3[%c3_37, %c0_38, %c0_39] : memref<4x1x256xf32, #tpu.memory_space<vmem>>, vector<1x1x256xf32>
    %81 = vector.shape_cast %80 : vector<1x1x256xf32> to vector<1x256xf32>
    %cst_40 = arith.constant 2.000000e+00 : f32
    %82 = vector.broadcast %cst_40 : f32 to vector<16x256xf32>
    %83 = arith.mulf %82, %79 : vector<16x256xf32>
    %84 = vector.broadcast %81 : vector<1x256xf32> to vector<16x256xf32>
    %85 = arith.subf %84, %83 : vector<16x256xf32>
    %cst_41 = arith.constant dense<0x7F800000> : vector<16xf32>
    %86 = vector.multi_reduction <minimumf>, %85, %cst_41 [1] : vector<16x256xf32> to vector<16xf32>
    %87 = vector.shape_cast %86 : vector<16xf32> to vector<16x1xf32>
    %88 = tpu.iota {dimensions = array<i32: 1>} : vector<16x256xi32>
    %89 = vector.broadcast %87 : vector<16x1xf32> to vector<16x256xf32>
    %90 = arith.cmpf ole, %85, %89 : vector<16x256xf32>
    %c256_i32_42 = arith.constant 256 : i32
    %91 = vector.broadcast %c256_i32_42 : i32 to vector<16x256xi32>
    %92 = arith.select %90, %88, %91 : vector<16x256xi1>, vector<16x256xi32>
    %cst_43 = arith.constant dense<2147483647> : vector<16xi32>
    %93 = vector.multi_reduction <minsi>, %92, %cst_43 [1] : vector<16x256xi32> to vector<16xi32>
    %94 = vector.shape_cast %93 : vector<16xi32> to vector<16x1xi32>
    %95 = vector.broadcast %94 : vector<16x1xi32> to vector<16x256xi32>
    %96 = arith.cmpi eq, %88, %95 : vector<16x256xi32>
    %97 = arith.extui %96 : vector<16x256xi1> to vector<16x256xi32>
    %98 = arith.sitofp %97 : vector<16x256xi32> to vector<16x256xf32>
    %cst_44 = arith.constant dense<0.000000e+00> : vector<16x128xf32>
    %99 = tpu.matmul %98, %78, %cst_44 {dimension_numbers = #tpu.dot_dimension_numbers<[1], [0], [0], [1], [0, 0, 1, 1], [], []>} : vector<16x256xf32>, vector<256x128xf32>, vector<16x128xf32> -> vector<16x128xf32>
    %100 = arith.addf %75, %99 : vector<16x128xf32>
    %c0_45 = arith.constant 0 : index
    %c0_46 = arith.constant 0 : index
    %101 = vector.load %arg4[%c0_45, %c0_46] : memref<128x256xf32, #tpu.memory_space<vmem>>, vector<128x256xf32>
    %cst_47 = arith.constant dense<0.000000e+00> : vector<16x256xf32>
    %102 = tpu.matmul %100, %101, %cst_47 {dimension_numbers = #tpu.dot_dimension_numbers<[1], [0], [0], [1], [0, 0, 1, 1], [], []>} : vector<16x128xf32>, vector<128x256xf32>, vector<16x256xf32> -> vector<16x256xf32>
    %c0_48 = arith.constant 0 : index
    %c0_49 = arith.constant 0 : index
    %103 = vector.load %arg5[%c0_48, %c0_49] : memref<1x256xf32, #tpu.memory_space<vmem>>, vector<1x256xf32>
    %104 = vector.broadcast %103 : vector<1x256xf32> to vector<16x256xf32>
    %105 = arith.addf %102, %104 : vector<16x256xf32>
    %c0_50 = arith.constant 0 : index
    %c0_51 = arith.constant 0 : index
    %106 = vector.load %arg6[%c0_50, %c0_51] : memref<16x1xf32, #tpu.memory_space<vmem>>, vector<16x1xf32>
    %107 = vector.broadcast %106 : vector<16x1xf32> to vector<16x256xf32>
    %108 = arith.mulf %105, %107 : vector<16x256xf32>
    %c0_52 = arith.constant 0 : index
    %c0_53 = arith.constant 0 : index
    %109 = vector.load %arg7[%c0_52, %c0_53] : memref<16x256xf32, #tpu.memory_space<vmem>>, vector<16x256xf32>
    tpu.vector_store %arg7[%c0_52, %c0_53], %108 {strides = array<i32>} : memref<16x256xf32, #tpu.memory_space<vmem>>, vector<16x256xf32>,
    return
  }
  func.func @transform_0(%arg0: i32) -> (i32, i32) {
    %c0_i32 = arith.constant 0 : i32
    %c0_i32_0 = arith.constant 0 : i32
    return %arg0, %c0_i32 : i32, i32
  }
  func.func @transform_1(%arg0: i32) -> (i32, i32, i32) {
    %c0_i32 = arith.constant 0 : i32
    %c0_i32_0 = arith.constant 0 : i32
    %c0_i32_1 = arith.constant 0 : i32
    %c0_i32_2 = arith.constant 0 : i32
    return %c0_i32, %c0_i32_0, %c0_i32_1 : i32, i32, i32
  }
  func.func @transform_2(%arg0: i32) -> (i32, i32, i32) {
    %c0_i32 = arith.constant 0 : i32
    %c0_i32_0 = arith.constant 0 : i32
    %c0_i32_1 = arith.constant 0 : i32
    %c0_i32_2 = arith.constant 0 : i32
    return %c0_i32, %c0_i32_0, %c0_i32_1 : i32, i32, i32
  }
  func.func @transform_3(%arg0: i32) -> (i32, i32) {
    %c0_i32 = arith.constant 0 : i32
    %c0_i32_0 = arith.constant 0 : i32
    %c0_i32_1 = arith.constant 0 : i32
    return %c0_i32, %c0_i32_0 : i32, i32
  }
  func.func @transform_4(%arg0: i32) -> (i32, i32) {
    %c0_i32 = arith.constant 0 : i32
    %c0_i32_0 = arith.constant 0 : i32
    %c0_i32_1 = arith.constant 0 : i32
    return %c0_i32, %c0_i32_0 : i32, i32
  }
  func.func @transform_5(%arg0: i32) -> (i32, i32) {
    %c0_i32 = arith.constant 0 : i32
    %c0_i32_0 = arith.constant 0 : i32
    return %arg0, %c0_i32 : i32, i32
  }
  func.func @transform_6(%arg0: i32) -> (i32, i32) {
    %c0_i32 = arith.constant 0 : i32
    %c0_i32_0 = arith.constant 0 : i32
    return %arg0, %c0_i32 : i32, i32
  }
}

</mosaic_0001>

<llo_original>
// kernel: tpu_custom_call.1
$region0: #{tpu_custom_call.1}
  #allocation0 [shape = 'u32[]', space=smem, size = 0x4, offset = 0x4, fixed_abs, tag = 'smem constant byte address 0x4 - core index']
  #allocation1 [shape = 'u32[144,128]{1,0:T(1,128)}', space=vmem, size = 0x12000, scoped, tag = 'internal scratch']
  %s0 = inlined_call_operand.vmem [shape: f32[16,128], index: 0, kind: input, shape index: {}]
  %s1 = inlined_call_operand.hbm [shape: f32[4,256,128], index: 1, kind: input, shape index: {}]
  %s2 = inlined_call_operand.vmem [shape: f32[4,1,256], index: 2, kind: input, shape index: {}]
  %s3 = inlined_call_operand.hbm [shape: f32[128,256], index: 3, kind: input, shape index: {}]
  %s4 = inlined_call_operand.vmem [shape: f32[1,256], index: 4, kind: input, shape index: {}]
  %s5 = inlined_call_operand.vmem [shape: f32[16,1], index: 5, kind: input, shape index: {}]
  %s6 = inlined_call_operand.hbm [shape: f32[16,256], index: 6, kind: output, shape index: {}]
  %s7 = sld [smem:[#allocation0]]
  $region42: #{tpu_custom_call.1} parent=0
    _
  %s9 = ssub.s32 1, %s7
  %s10 = scalar_select 0, %s9, %s7
  $region1: #{tpu_custom_call.1} parent=0
    #allocation2 [shape = 'u8[524288]{0}', space=vmem, size = 0x80000, scoped, tag = 'input window, operand 1, single buffered']
    #allocation3 [shape = 's32[1]{0}', space=sflag, size = 0x4, scoped, tag = 'scoped memory for tpu_custom_call.1']
    #allocation4 [shape = 's32[1]{0}', space=sflag, size = 0x4, scoped, tag = 'scoped memory for tpu_custom_call.1']
    #allocation5 [shape = 'u8[131072]{0}', space=vmem, size = 0x20000, scoped, tag = 'input window, operand 3, single buffered']
    #allocation6 [shape = 's32[1]{0}', space=sflag, size = 0x4, scoped, tag = 'scoped memory for tpu_custom_call.1']
    #allocation7 [shape = 'u8[16384]{0}', space=vmem, size = 0x4000, scoped, tag = 'output window, operand 0, single buffered']
    %11 = vsyncpa [#allocation3], 0
    %12 = vsyncpa [#allocation6], 0
    %13 = vsyncpa [#allocation4], 0
    // Predicated region
    $region2: #{tpu_custom_call.1} parent=1 // pred_check
      _
    $region3: #{tpu_custom_call.1} parent=1 // pred_check_branch
      %15 = sbr.rel (0) target = $region5
    $region4: #{tpu_custom_call.1} parent=1 // pred_region
      _
    $region5: #{tpu_custom_call.1} parent=1 // pred_fallthru
      _
    // Predicated region
    $region6: #{tpu_custom_call.1} parent=1 // pred_check
      _
    $region7: #{tpu_custom_call.1} parent=1 // pred_check_branch
      %17 = sbr.rel (0) target = $region9
    $region8: #{tpu_custom_call.1} parent=1 // pred_region
      %s19 = ssub.s32 16384, 16384
      %20 = vsyncadd [#allocation3], %s19
      %s21 = sshll.u32 [#allocation2], 4
      %s22 = int_to_ptr.vmem [resolvable:$true] %s21
      %27 = dma.hbm_to_vmem [thread:$0]  %s1, 16384, %s22, [#allocation3], 128, 128, 8
    $region9: #{tpu_custom_call.1} parent=1 // pred_fallthru
      _
    // Predicated region
    $region10: #{tpu_custom_call.1} parent=1 // pred_check
      _
    $region11: #{tpu_custom_call.1} parent=1 // pred_check_branch
      %29 = sbr.rel (0) target = $region13
    $region12: #{tpu_custom_call.1} parent=1 // pred_region
      _
    $region13: #{tpu_custom_call.1} parent=1 // pred_fallthru
      _
    // Predicated region
    $region14: #{tpu_custom_call.1} parent=1 // pred_check
      _
    $region15: #{tpu_custom_call.1} parent=1 // pred_check_branch
      %31 = sbr.rel (0) target = $region17
    $region16: #{tpu_custom_call.1} parent=1 // pred_region
      %s33 = ssub.s32 4096, 4096
      %34 = vsyncadd [#allocation6], %s33
      %s35 = sshll.u32 [#allocation5], 4
      %s36 = int_to_ptr.vmem [resolvable:$true] %s35
      %41 = dma.hbm_to_vmem [thread:$0]  %s3, 4096, %s36, [#allocation6], 256, 256, 16
    $region17: #{tpu_custom_call.1} parent=1 // pred_fallthru
      _
    // Predicated region
    $region18: #{tpu_custom_call.1} parent=1 // pred_check
      _
    $region19: #{tpu_custom_call.1} parent=1 // pred_check_branch
      %43 = sbr.rel (0) target = $region21
    $region20: #{tpu_custom_call.1} parent=1 // pred_region
      _
    $region21: #{tpu_custom_call.1} parent=1 // pred_fallthru
      _
    // Predicated region
    $region22: #{tpu_custom_call.1} parent=1 // pred_check
      _
    $region23: #{tpu_custom_call.1} parent=1 // pred_check_branch
      %45 = sbr.rel (0) target = $region25
    $region24: #{tpu_custom_call.1} parent=1 // pred_region
      _
    $region25: #{tpu_custom_call.1} parent=1 // pred_fallthru
      _
    // Predicated region
    $region26: #{tpu_custom_call.1} parent=1 // pred_check
      _
    $region27: #{tpu_custom_call.1} parent=1 // pred_check_branch
      %47 = sbr.rel (0) target = $region29
    $region28: #{tpu_custom_call.1} parent=1 // pred_region
      %48 = dma.done [#allocation3], 16384
    $region29: #{tpu_custom_call.1} parent=1 // pred_fallthru
      _
    // Predicated region
    $region30: #{tpu_custom_call.1} parent=1 // pred_check
      _
    $region31: #{tpu_custom_call.1} parent=1 // pred_check_branch
      %50 = sbr.rel (0) target = $region33
    $region32: #{tpu_custom_call.1} parent=1 // pred_region
      %51 = dma.done [#allocation6], 4096
    $region33: #{tpu_custom_call.1} parent=1 // pred_fallthru
      _
    %v52 = vld [vmem:[%s0] sm:$0xff]
    %v53 = vld [vmem:[%s0 + $0x8] sm:$0xff]
    %v54 = vld [vmem:[#allocation2] sm:$0xff]
    %v55 = vld [vmem:[#allocation2 + $0x8] sm:$0xff]
    %v56 = vld [vmem:[#allocation2 + $0x10] sm:$0xff]
    %v57 = vld [vmem:[#allocation2 + $0x18] sm:$0xff]
    %v58 = vld [vmem:[#allocation2 + $0x20] sm:$0xff]
    %v59 = vld [vmem:[#allocation2 + $0x28] sm:$0xff]
    %v60 = vld [vmem:[#allocation2 + $0x30] sm:$0xff]
    %v61 = vld [vmem:[#allocation2 + $0x38] sm:$0xff]
    %v62 = vld [vmem:[#allocation2 + $0x40] sm:$0xff]
    %v63 = vld [vmem:[#allocation2 + $0x48] sm:$0xff]
    %v64 = vld [vmem:[#allocation2 + $0x50] sm:$0xff]
    %v65 = vld [vmem:[#allocation2 + $0x58] sm:$0xff]
    %v66 = vld [vmem:[#allocation2 + $0x60] sm:$0xff]
    %v67 = vld [vmem:[#allocation2 + $0x68] sm:$0xff]
    %v68 = vld [vmem:[#allocation2 + $0x70] sm:$0xff]
    %v69 = vld [vmem:[#allocation2 + $0x78] sm:$0xff]
    %v70 = vld [vmem:[#allocation2 + $0x80] sm:$0xff]
    %v71 = vld [vmem:[#allocation2 + $0x88] sm:$0xff]
    %v72 = vld [vmem:[#allocation2 + $0x90] sm:$0xff]
    %v73 = vld [vmem:[#allocation2 + $0x98] sm:$0xff]
    %v74 = vld [vmem:[#allocation2 + $0xa0] sm:$0xff]
    %v75 = vld [vmem:[#allocation2 + $0xa8] sm:$0xff]
    %v76 = vld [vmem:[#allocation2 + $0xb0] sm:$0xff]
    %v77 = vld [vmem:[#allocation2 + $0xb8] sm:$0xff]
    %v78 = vld [vmem:[#allocation2 + $0xc0] sm:$0xff]
    %v79 = vld [vmem:[#allocation2 + $0xc8] sm:$0xff]
    %v80 = vld [vmem:[#allocation2 + $0xd0] sm:$0xff]
    %v81 = vld [vmem:[#allocation2 + $0xd8] sm:$0xff]
    %v82 = vld [vmem:[#allocation2 + $0xe0] sm:$0xff]
    %v83 = vld [vmem:[#allocation2 + $0xe8] sm:$0xff]
    %v84 = vld [vmem:[#allocation2 + $0xf0] sm:$0xff]
    %v85 = vld [vmem:[#allocation2 + $0xf8] sm:$0xff]
    %86 = vmatprep.subr.mxu0 0.0
    %87 = vmatpush1.xpose.msra.mxu0 %v54
    %88 = vmatprep.subr.mxu0 0.0
    %89 = vmatpush1.xpose.msra.mxu0 %v55
    %90 = vmatprep.subr.mxu0 0.0
    %91 = vmatpush1.xpose.msra.mxu0 %v56
    %92 = vmatprep.subr.mxu0 0.0
    %93 = vmatpush1.xpose.msra.mxu0 %v57
    %94 = vmatprep.subr.mxu0 0.0
    %95 = vmatpush1.xpose.msra.mxu0 %v58
    %96 = vmatprep.subr.mxu0 0.0
    %97 = vmatpush1.xpose.msra.mxu0 %v59
    %98 = vmatprep.subr.mxu0 0.0
    %99 = vmatpush1.xpose.msra.mxu0 %v60
    %100 = vmatprep.subr.mxu0 0.0
    %101 = vmatpush1.xpose.msra.mxu0 %v61
    %102 = vmatprep.subr.mxu0 0.0
    %103 = vmatpush1.xpose.msra.mxu0 %v62
    %104 = vmatprep.subr.mxu0 0.0
    %105 = vmatpush1.xpose.msra.mxu0 %v63
    %106 = vmatprep.subr.mxu0 0.0
    %107 = vmatpush1.xpose.msra.mxu0 %v64
    %108 = vmatprep.subr.mxu0 0.0
    %109 = vmatpush1.xpose.msra.mxu0 %v65
    %110 = vmatprep.subr.mxu0 0.0
    %111 = vmatpush1.xpose.msra.mxu0 %v66
    %112 = vmatprep.subr.mxu0 0.0
    %113 = vmatpush1.xpose.msra.mxu0 %v67
    %114 = vmatprep.subr.mxu0 0.0
    %115 = vmatpush1.xpose.msra.mxu0 %v68
    %116 = vmatprep.subr.mxu0 0.0
    %117 = vmatpush1.xpose.msra.mxu0 %v69
    %118 = vmatprep.subr.mxu0 0.0
    %119 = vmatpush1.xpose.msra.mxu0 %v70
    %120 = vmatprep.subr.mxu0 0.0
    %121 = vmatpush1.xpose.msra.mxu0 %v71
    %122 = vmatprep.subr.mxu0 0.0
    %123 = vmatpush1.xpose.msra.mxu0 %v72
    %124 = vmatprep.subr.mxu0 0.0
    %125 = vmatpush1.xpose.msra.mxu0 %v73
    %126 = vmatprep.subr.mxu0 0.0
    %127 = vmatpush1.xpose.msra.mxu0 %v74
    %128 = vmatprep.subr.mxu0 0.0
    %129 = vmatpush1.xpose.msra.mxu0 %v75
    %130 = vmatprep.subr.mxu0 0.0
    %131 = vmatpush1.xpose.msra.mxu0 %v76
    %132 = vmatprep.subr.mxu0 0.0
    %133 = vmatpush1.xpose.msra.mxu0 %v77
    %134 = vmatprep.subr.mxu0 0.0
    %135 = vmatpush1.xpose.msra.mxu0 %v78
    %136 = vmatprep.subr.mxu0 0.0
    %137 = vmatpush1.xpose.msra.mxu0 %v79
    %138 = vmatprep.subr.mxu0 0.0
    %139 = vmatpush1.xpose.msra.mxu0 %v80
    %140 = vmatprep.subr.mxu0 0.0
    %141 = vmatpush1.xpose.msra.mxu0 %v81
    %142 = vmatprep.subr.mxu0 0.0
    %143 = vmatpush1.xpose.msra.mxu0 %v82
    %144 = vmatprep.subr.mxu0 0.0
    %145 = vmatpush1.xpose.msra.mxu0 %v83
    %146 = vmatprep.subr.mxu0 0.0
    %147 = vmatpush1.xpose.msra.mxu0 %v84
    %148 = vmatprep.subr.mxu0 0.0
    %149 = vmatpush1.xpose.msra.mxu0 %v85
    %150 = vmatprep.mubr.f32.mxu0 0.0
    %151 = vmatmul.mubr.f32.gmra.mrb[0].mxu0 %v52
    %v152 = vpop.f32.mrb[0].mxu0
    %v153 = vadd.f32 0.0, %v152
    %v154 = vpop.f32.mrb[0].mxu0
    %v155 = vadd.f32 0.0, %v154
    %156 = vmatprep.mubr.f32.mxu0 0.0
    %157 = vmatmul.mubr.f32.gmra.mrb[0].mxu0 %v53
    %v158 = vpop.f32.mrb[0].mxu0
    %v159 = vadd.f32 0.0, %v158
    %v160 = vpop.f32.mrb[0].mxu0
    %v161 = vadd.f32 0.0, %v160
    %162 = vdwg.mxu0
    %v163 = vld [vmem:[%s2] sm:$0x3]
    %v164 = vmul.f32 %v153, 2.0
    %v165 = vmul.f32 %v155, 2.0
    %v166 = vmul.f32 %v159, 2.0
    %v167 = vmul.f32 %v161, 2.0
    %v169 = vlaneseq
    %v170 = vshrl.u32 %v169, 7
    %v171 = vsub.s32 0, %v170
    %v172 = vrot.slane %v163, %v171
    %v173 = vlaneseq
    %v174 = vshrl.u32 %v173, 7
    %v175 = vsub.s32 1, %v174
    %v176 = vrot.slane %v163, %v175
    %v179 = vsub.f32 %v172, %v164
    %v180 = vsub.f32 %v176, %v165
    %v181 = vsub.f32 %v172, %v166
    %v182 = vsub.f32 %v176, %v167
    %v183 = vmin.f32 %v179, %v180
    %184 = vmin.xlane.f32.xlu0 %v183
    %v185 = vpop.xlane.xlu0 %184
    %v186 = vmin.f32 %v181, %v182
    %187 = vmin.xlane.f32.xlu0 %v186
    %v188 = vpop.xlane.xlu0 %187
    %v189 = vlaneseq
    %v190 = vand.u32 %v189, 127
    %v191 = vadd.s32 %v190, 128
    %vm192 = vcmp.le.f32.partialorder %v179, %v185
    %vm193 = vcmp.le.f32.partialorder %v180, %v185
    %vm194 = vcmp.le.f32.partialorder %v181, %v188
    %vm195 = vcmp.le.f32.partialorder %v182, %v188
    %v196 = vsel %vm192, %v190, 256
    %v197 = vsel %vm193, %v191, 256
    %v198 = vsel %vm194, %v190, 256
    %v199 = vsel %vm195, %v191, 256
    %vm200 = vcmp.lt.s32.totalorder %v196, %v197
    %v201 = vsel %vm200, %v196, %v197
    %v202 = vand.u32 %v201, 65535
    %v203 = vshra.s32 %v201, 16
    %v204 = vcvt.s32.f32 %v202
    %v205 = vcvt.s32.f32 %v203
    %206 = vmin.xlane.f32.xlu0 %v205
    %v207 = vpop.xlane.xlu0 %206
    %vm208 = vcmp.eq.f32.partialorder %v205, %v207
    %v209 = vsel %vm208, %v204, inf
    %210 = vmin.xlane.f32.xlu0 %v209
    %v211 = vpop.xlane.xlu0 %210
    %v212 = vcvt.f32.s32 %v211
    %v213 = vcvt.f32.s32 %v207
    %v214 = vshll.u32 %v213, 16
    %v215 = vadd.s32 %v214, %v212
    %vm216 = vcmp.lt.s32.totalorder %v198, %v199
    %v217 = vsel %vm216, %v198, %v199
    %v218 = vand.u32 %v217, 65535
    %v219 = vshra.s32 %v217, 16
    %v220 = vcvt.s32.f32 %v218
    %v221 = vcvt.s32.f32 %v219
    %222 = vmin.xlane.f32.xlu0 %v221
    %v223 = vpop.xlane.xlu0 %222
    %vm224 = vcmp.eq.f32.partialorder %v221, %v223
    %v225 = vsel %vm224, %v220, inf
    %226 = vmin.xlane.f32.xlu0 %v225
    %v227 = vpop.xlane.xlu0 %226
    %v228 = vcvt.f32.s32 %v227
    %v229 = vcvt.f32.s32 %v223
    %v230 = vshll.u32 %v229, 16
    %v231 = vadd.s32 %v230, %v228
    %vm232 = vcmp.eq.s32.totalorder %v190, %v215
    %vm233 = vcmp.eq.s32.totalorder %v191, %v215
    %vm234 = vcmp.eq.s32.totalorder %v190, %v231
    %vm235 = vcmp.eq.s32.totalorder %v191, %v231
    %v236 = vsel %vm232, 1, 0
    %v237 = vsel %vm233, 1, 0
    %v238 = vsel %vm234, 1, 0
    %v239 = vsel %vm235, 1, 0
    %v240 = vcvt.s32.f32 %v236
    %v241 = vcvt.s32.f32 %v237
    %v242 = vcvt.s32.f32 %v238
    %v243 = vcvt.s32.f32 %v239
    %244 = vmatprep.subr.mxu0 0.0
    %245 = vmatpush1.msra.mxu0 %v54
    %246 = vmatprep.subr.mxu0 0.0
    %247 = vmatpush1.msra.mxu0 %v55
    %248 = vmatprep.subr.mxu0 0.0
    %249 = vmatpush1.msra.mxu0 %v56
    %250 = vmatprep.subr.mxu0 0.0
    %251 = vmatpush1.msra.mxu0 %v57
    %252 = vmatprep.subr.mxu0 0.0
    %253 = vmatpush1.msra.mxu0 %v58
    %254 = vmatprep.subr.mxu0 0.0
    %255 = vmatpush1.msra.mxu0 %v59
    %256 = vmatprep.subr.mxu0 0.0
    %257 = vmatpush1.msra.mxu0 %v60
    %258 = vmatprep.subr.mxu0 0.0
    %259 = vmatpush1.msra.mxu0 %v61
    %260 = vmatprep.subr.mxu0 0.0
    %261 = vmatpush1.msra.mxu0 %v62
    %262 = vmatprep.subr.mxu0 0.0
    %263 = vmatpush1.msra.mxu0 %v63
    %264 = vmatprep.subr.mxu0 0.0
    %265 = vmatpush1.msra.mxu0 %v64
    %266 = vmatprep.subr.mxu0 0.0
    %267 = vmatpush1.msra.mxu0 %v65
    %268 = vmatprep.subr.mxu0 0.0
    %269 = vmatpush1.msra.mxu0 %v66
    %270 = vmatprep.subr.mxu0 0.0
    %271 = vmatpush1.msra.mxu0 %v67
    %272 = vmatprep.subr.mxu0 0.0
    %273 = vmatpush1.msra.mxu0 %v68
    %274 = vmatprep.subr.mxu0 0.0
    %275 = vmatpush1.msra.mxu0 %v69
    %276 = vmatprep.subr.mxu0 0.0
    %277 = vmatpush1.msra.mxu0 %v70
    %278 = vmatprep.subr.mxu0 0.0
    %279 = vmatpush1.msra.mxu0 %v71
    %280 = vmatprep.subr.mxu0 0.0
    %281 = vmatpush1.msra.mxu0 %v72
    %282 = vmatprep.subr.mxu0 0.0
    %283 = vmatpush1.msra.mxu0 %v73
    %284 = vmatprep.subr.mxu0 0.0
    %285 = vmatpush1.msra.mxu0 %v74
    %286 = vmatprep.subr.mxu0 0.0
    %287 = vmatpush1.msra.mxu0 %v75
    %288 = vmatprep.subr.mxu0 0.0
    %289 = vmatpush1.msra.mxu0 %v76
    %290 = vmatprep.subr.mxu0 0.0
    %291 = vmatpush1.msra.mxu0 %v77
    %292 = vmatprep.subr.mxu0 0.0
    %293 = vmatpush1.msra.mxu0 %v78
    %294 = vmatprep.subr.mxu0 0.0
    %295 = vmatpush1.msra.mxu0 %v79
    %296 = vmatprep.subr.mxu0 0.0
    %297 = vmatpush1.msra.mxu0 %v80
    %298 = vmatprep.subr.mxu0 0.0
    %299 = vmatpush1.msra.mxu0 %v81
    %300 = vmatprep.subr.mxu0 0.0
    %301 = vmatpush1.msra.mxu0 %v82
    %302 = vmatprep.subr.mxu0 0.0
    %303 = vmatpush1.msra.mxu0 %v83
    %304 = vmatprep.subr.mxu0 0.0
    %305 = vmatpush1.msra.mxu0 %v84
    %306 = vmatprep.subr.mxu0 0.0
    %307 = vmatpush1.msra.mxu0 %v85
    %308 = vmatprep.mubr.f32.mxu0 %v241
    %309 = vmatmul.mubr.f32.gmra.mrb[0].mxu0 %v240
    %v310 = vpop.f32.mrb[0].mxu0
    %v311 = vadd.f32 0.0, %v310
    %v312 = vpop.f32.mrb[0].mxu0
    %313 = vmatprep.mubr.f32.mxu0 %v243
    %314 = vmatmul.mubr.f32.gmra.mrb[0].mxu0 %v242
    %v315 = vpop.f32.mrb[0].mxu0
    %v316 = vadd.f32 0.0, %v315
    %v317 = vpop.f32.mrb[0].mxu0
    %318 = vdwg.mxu0
    %v319 = vadd.f32 %v311, 0.0
    %v320 = vadd.f32 %v316, 0.0
    %v321 = vsub.f32 %v52, %v311
    %v322 = vsub.f32 %v53, %v316
    %s323 = scalar_lea.vmem [#allocation2], 256
    %v324 = vld [vmem:[%s323] sm:$0xff]
    %v325 = vld [vmem:[%s323 + $0x8] sm:$0xff]
    %v326 = vld [vmem:[%s323 + $0x10] sm:$0xff]
    %v327 = vld [vmem:[%s323 + $0x18] sm:$0xff]
    %v328 = vld [vmem:[%s323 + $0x20] sm:$0xff]
    %v329 = vld [vmem:[%s323 + $0x28] sm:$0xff]
    %v330 = vld [vmem:[%s323 + $0x30] sm:$0xff]
    %v331 = vld [vmem:[%s323 + $0x38] sm:$0xff]
    %v332 = vld [vmem:[%s323 + $0x40] sm:$0xff]
    %v333 = vld [vmem:[%s323 + $0x48] sm:$0xff]
    %v334 = vld [vmem:[%s323 + $0x50] sm:$0xff]
    %v335 = vld [vmem:[%s323 + $0x58] sm:$0xff]
    %v336 = vld [vmem:[%s323 + $0x60] sm:$0xff]
    %v337 = vld [vmem:[%s323 + $0x68] sm:$0xff]
    %v338 = vld [vmem:[%s323 + $0x70] sm:$0xff]
    %v339 = vld [vmem:[%s323 + $0x78] sm:$0xff]
    %v340 = vld [vmem:[%s323 + $0x80] sm:$0xff]
    %v341 = vld [vmem:[%s323 + $0x88] sm:$0xff]
    %v342 = vld [vmem:[%s323 + $0x90] sm:$0xff]
    %v343 = vld [vmem:[%s323 + $0x98] sm:$0xff]
    %v344 = vld [vmem:[%s323 + $0xa0] sm:$0xff]
    %v345 = vld [vmem:[%s323 + $0xa8] sm:$0xff]
    %v346 = vld [vmem:[%s323 + $0xb0] sm:$0xff]
    %v347 = vld [vmem:[%s323 + $0xb8] sm:$0xff]
    %v348 = vld [vmem:[%s323 + $0xc0] sm:$0xff]
    %v349 = vld [vmem:[%s323 + $0xc8] sm:$0xff]
    %v350 = vld [vmem:[%s323 + $0xd0] sm:$0xff]
    %v351 = vld [vmem:[%s323 + $0xd8] sm:$0xff]
    %v352 = vld [vmem:[%s323 + $0xe0] sm:$0xff]
    %v353 = vld [vmem:[%s323 + $0xe8] sm:$0xff]
    %v354 = vld [vmem:[%s323 + $0xf0] sm:$0xff]
    %v355 = vld [vmem:[%s323 + $0xf8] sm:$0xff]
    %356 = vmatprep.subr.mxu0 0.0
    %357 = vmatpush1.xpose.msra.mxu0 %v324
    %358 = vmatprep.subr.mxu0 0.0
    %359 = vmatpush1.xpose.msra.mxu0 %v325
    %360 = vmatprep.subr.mxu0 0.0
    %361 = vmatpush1.xpose.msra.mxu0 %v326
    %362 = vmatprep.subr.mxu0 0.0
    %363 = vmatpush1.xpose.msra.mxu0 %v327
    %364 = vmatprep.subr.mxu0 0.0
    %365 = vmatpush1.xpose.msra.mxu0 %v328
    %366 = vmatprep.subr.mxu0 0.0
    %367 = vmatpush1.xpose.msra.mxu0 %v329
    %368 = vmatprep.subr.mxu0 0.0
    %369 = vmatpush1.xpose.msra.mxu0 %v330
    %370 = vmatprep.subr.mxu0 0.0
    %371 = vmatpush1.xpose.msra.mxu0 %v331
    %372 = vmatprep.subr.mxu0 0.0
    %373 = vmatpush1.xpose.msra.mxu0 %v332
    %374 = vmatprep.subr.mxu0 0.0
    %375 = vmatpush1.xpose.msra.mxu0 %v333
    %376 = vmatprep.subr.mxu0 0.0
    %377 = vmatpush1.xpose.msra.mxu0 %v334
    %378 = vmatprep.subr.mxu0 0.0
    %379 = vmatpush1.xpose.msra.mxu0 %v335
    %380 = vmatprep.subr.mxu0 0.0
    %381 = vmatpush1.xpose.msra.mxu0 %v336
    %382 = vmatprep.subr.mxu0 0.0
    %383 = vmatpush1.xpose.msra.mxu0 %v337
    %384 = vmatprep.subr.mxu0 0.0
    %385 = vmatpush1.xpose.msra.mxu0 %v338
    %386 = vmatprep.subr.mxu0 0.0
    %387 = vmatpush1.xpose.msra.mxu0 %v339
    %388 = vmatprep.subr.mxu0 0.0
    %389 = vmatpush1.xpose.msra.mxu0 %v340
    %390 = vmatprep.subr.mxu0 0.0
    %391 = vmatpush1.xpose.msra.mxu0 %v341
    %392 = vmatprep.subr.mxu0 0.0
    %393 = vmatpush1.xpose.msra.mxu0 %v342
    %394 = vmatprep.subr.mxu0 0.0
    %395 = vmatpush1.xpose.msra.mxu0 %v343
    %396 = vmatprep.subr.mxu0 0.0
    %397 = vmatpush1.xpose.msra.mxu0 %v344
    %398 = vmatprep.subr.mxu0 0.0
    %399 = vmatpush1.xpose.msra.mxu0 %v345
    %400 = vmatprep.subr.mxu0 0.0
    %401 = vmatpush1.xpose.msra.mxu0 %v346
    %402 = vmatprep.subr.mxu0 0.0
    %403 = vmatpush1.xpose.msra.mxu0 %v347
    %404 = vmatprep.subr.mxu0 0.0
    %405 = vmatpush1.xpose.msra.mxu0 %v348
    %406 = vmatprep.subr.mxu0 0.0
    %407 = vmatpush1.xpose.msra.mxu0 %v349
    %408 = vmatprep.subr.mxu0 0.0
    %409 = vmatpush1.xpose.msra.mxu0 %v350
    %410 = vmatprep.subr.mxu0 0.0
    %411 = vmatpush1.xpose.msra.mxu0 %v351
    %412 = vmatprep.subr.mxu0 0.0
    %413 = vmatpush1.xpose.msra.mxu0 %v352
    %414 = vmatprep.subr.mxu0 0.0
    %415 = vmatpush1.xpose.msra.mxu0 %v353
    %416 = vmatprep.subr.mxu0 0.0
    %417 = vmatpush1.xpose.msra.mxu0 %v354
    %418 = vmatprep.subr.mxu0 0.0
    %419 = vmatpush1.xpose.msra.mxu0 %v355
    %420 = vmatprep.mubr.f32.mxu0 0.0
    %421 = vmatmul.mubr.f32.gmra.mrb[0].mxu0 %v321
    %v422 = vpop.f32.mrb[0].mxu0
    %v423 = vadd.f32 0.0, %v422
    %v424 = vpop.f32.mrb[0].mxu0
    %v425 = vadd.f32 0.0, %v424
    %426 = vmatprep.mubr.f32.mxu0 0.0
    %427 = vmatmul.mubr.f32.gmra.mrb[0].mxu0 %v322
    %v428 = vpop.f32.mrb[0].mxu0
    %v429 = vadd.f32 0.0, %v428
    %v430 = vpop.f32.mrb[0].mxu0
    %v431 = vadd.f32 0.0, %v430
    %432 = vdwg.mxu0
    %s433 = scalar_lea.vmem %s2, 2
    %v434 = vld [vmem:[%s433] sm:$0x3]
    %v435 = vmul.f32 %v423, 2.0
    %v436 = vmul.f32 %v425, 2.0
    %v437 = vmul.f32 %v429, 2.0
    %v438 = vmul.f32 %v431, 2.0
    %v440 = vlaneseq
    %v441 = vshrl.u32 %v440, 7
    %v442 = vsub.s32 0, %v441
    %v443 = vrot.slane %v434, %v442
    %v444 = vlaneseq
    %v445 = vshrl.u32 %v444, 7
    %v446 = vsub.s32 1, %v445
    %v447 = vrot.slane %v434, %v446
    %v450 = vsub.f32 %v443, %v435
    %v451 = vsub.f32 %v447, %v436
    %v452 = vsub.f32 %v443, %v437
    %v453 = vsub.f32 %v447, %v438
    %v454 = vmin.f32 %v450, %v451
    %455 = vmin.xlane.f32.xlu0 %v454
    %v456 = vpop.xlane.xlu0 %455
    %v457 = vmin.f32 %v452, %v453
    %458 = vmin.xlane.f32.xlu0 %v457
    %v459 = vpop.xlane.xlu0 %458
    %vm460 = vcmp.le.f32.partialorder %v450, %v456
    %vm461 = vcmp.le.f32.partialorder %v451, %v456
    %vm462 = vcmp.le.f32.partialorder %v452, %v459
    %vm463 = vcmp.le.f32.partialorder %v453, %v459
    %v464 = vsel %vm460, %v190, 256
    %v465 = vsel %vm461, %v191, 256
    %v466 = vsel %vm462, %v190, 256
    %v467 = vsel %vm463, %v191, 256
    %vm468 = vcmp.lt.s32.totalorder %v464, %v465
    %v469 = vsel %vm468, %v464, %v465
    %v470 = vand.u32 %v469, 65535
    %v471 = vshra.s32 %v469, 16
    %v472 = vcvt.s32.f32 %v470
    %v473 = vcvt.s32.f32 %v471
    %474 = vmin.xlane.f32.xlu0 %v473
    %v475 = vpop.xlane.xlu0 %474
    %vm476 = vcmp.eq.f32.partialorder %v473, %v475
    %v477 = vsel %vm476, %v472, inf
    %478 = vmin.xlane.f32.xlu0 %v477
    %v479 = vpop.xlane.xlu0 %478
    %v480 = vcvt.f32.s32 %v479
    %v481 = vcvt.f32.s32 %v475
    %v482 = vshll.u32 %v481, 16
    %v483 = vadd.s32 %v482, %v480
    %vm484 = vcmp.lt.s32.totalorder %v466, %v467
    %v485 = vsel %vm484, %v466, %v467
    %v486 = vand.u32 %v485, 65535
    %v487 = vshra.s32 %v485, 16
    %v488 = vcvt.s32.f32 %v486
    %v489 = vcvt.s32.f32 %v487
    %490 = vmin.xlane.f32.xlu0 %v489
    %v491 = vpop.xlane.xlu0 %490
    %vm492 = vcmp.eq.f32.partialorder %v489, %v491
    %v493 = vsel %vm492, %v488, inf
    %494 = vmin.xlane.f32.xlu0 %v493
    %v495 = vpop.xlane.xlu0 %494
    %v496 = vcvt.f32.s32 %v495
    %v497 = vcvt.f32.s32 %v491
    %v498 = vshll.u32 %v497, 16
    %v499 = vadd.s32 %v498, %v496
    %vm500 = vcmp.eq.s32.totalorder %v190, %v483
    %vm501 = vcmp.eq.s32.totalorder %v191, %v483
    %vm502 = vcmp.eq.s32.totalorder %v190, %v499
    %vm503 = vcmp.eq.s32.totalorder %v191, %v499
    %v504 = vsel %vm500, 1, 0
    %v505 = vsel %vm501, 1, 0
    %v506 = vsel %vm502, 1, 0
    %v507 = vsel %vm503, 1, 0
    %v508 = vcvt.s32.f32 %v504
    %v509 = vcvt.s32.f32 %v505
    %v510 = vcvt.s32.f32 %v506
    %v511 = vcvt.s32.f32 %v507
    %512 = vmatprep.subr.mxu0 0.0
    %513 = vmatpush1.msra.mxu0 %v324
    %514 = vmatprep.subr.mxu0 0.0
    %515 = vmatpush1.msra.mxu0 %v325
    %516 = vmatprep.subr.mxu0 0.0
    %517 = vmatpush1.msra.mxu0 %v326
    %518 = vmatprep.subr.mxu0 0.0
    %519 = vmatpush1.msra.mxu0 %v327
    %520 = vmatprep.subr.mxu0 0.0
    %521 = vmatpush1.msra.mxu0 %v328
    %522 = vmatprep.subr.mxu0 0.0
    %523 = vmatpush1.msra.mxu0 %v329
    %524 = vmatprep.subr.mxu0 0.0
    %525 = vmatpush1.msra.mxu0 %v330
    %526 = vmatprep.subr.mxu0 0.0
    %527 = vmatpush1.msra.mxu0 %v331
    %528 = vmatprep.subr.mxu0 0.0
    %529 = vmatpush1.msra.mxu0 %v332
    %530 = vmatprep.subr.mxu0 0.0
    %531 = vmatpush1.msra.mxu0 %v333
    %532 = vmatprep.subr.mxu0 0.0
    %533 = vmatpush1.msra.mxu0 %v334
    %534 = vmatprep.subr.mxu0 0.0
    %535 = vmatpush1.msra.mxu0 %v335
    %536 = vmatprep.subr.mxu0 0.0
    %537 = vmatpush1.msra.mxu0 %v336
    %538 = vmatprep.subr.mxu0 0.0
    %539 = vmatpush1.msra.mxu0 %v337
    %540 = vmatprep.subr.mxu0 0.0
    %541 = vmatpush1.msra.mxu0 %v338
    %542 = vmatprep.subr.mxu0 0.0
    %543 = vmatpush1.msra.mxu0 %v339
    %544 = vmatprep.subr.mxu0 0.0
    %545 = vmatpush1.msra.mxu0 %v340
    %546 = vmatprep.subr.mxu0 0.0
    %547 = vmatpush1.msra.mxu0 %v341
    %548 = vmatprep.subr.mxu0 0.0
    %549 = vmatpush1.msra.mxu0 %v342
    %550 = vmatprep.subr.mxu0 0.0
    %551 = vmatpush1.msra.mxu0 %v343
    %552 = vmatprep.subr.mxu0 0.0
    %553 = vmatpush1.msra.mxu0 %v344
    %554 = vmatprep.subr.mxu0 0.0
    %555 = vmatpush1.msra.mxu0 %v345
    %556 = vmatprep.subr.mxu0 0.0
    %557 = vmatpush1.msra.mxu0 %v346
    %558 = vmatprep.subr.mxu0 0.0
    %559 = vmatpush1.msra.mxu0 %v347
    %560 = vmatprep.subr.mxu0 0.0
    %561 = vmatpush1.msra.mxu0 %v348
    %562 = vmatprep.subr.mxu0 0.0
    %563 = vmatpush1.msra.mxu0 %v349
    %564 = vmatprep.subr.mxu0 0.0
    %565 = vmatpush1.msra.mxu0 %v350
    %566 = vmatprep.subr.mxu0 0.0
    %567 = vmatpush1.msra.mxu0 %v351
    %568 = vmatprep.subr.mxu0 0.0
    %569 = vmatpush1.msra.mxu0 %v352
    %570 = vmatprep.subr.mxu0 0.0
    %571 = vmatpush1.msra.mxu0 %v353
    %572 = vmatprep.subr.mxu0 0.0
    %573 = vmatpush1.msra.mxu0 %v354
    %574 = vmatprep.subr.mxu0 0.0
    %575 = vmatpush1.msra.mxu0 %v355
    %576 = vmatprep.mubr.f32.mxu0 %v509
    %577 = vmatmul.mubr.f32.gmra.mrb[0].mxu0 %v508
    %v578 = vpop.f32.mrb[0].mxu0
    %v579 = vadd.f32 0.0, %v578
    %v580 = vpop.f32.mrb[0].mxu0
    %581 = vmatprep.mubr.f32.mxu0 %v511
    %582 = vmatmul.mubr.f32.gmra.mrb[0].mxu0 %v510
    %v583 = vpop.f32.mrb[0].mxu0
    %v584 = vadd.f32 0.0, %v583
    %v585 = vpop.f32.mrb[0].mxu0
    %586 = vdwg.mxu0
    %v587 = vadd.f32 %v319, %v579
    %v588 = vadd.f32 %v320, %v584
    %v589 = vsub.f32 %v321, %v579
    %v590 = vsub.f32 %v322, %v584
    %s591 = scalar_lea.vmem [#allocation2], 512
    %v592 = vld [vmem:[%s591] sm:$0xff]
    %v593 = vld [vmem:[%s591 + $0x8] sm:$0xff]
    %v594 = vld [vmem:[%s591 + $0x10] sm:$0xff]
    %v595 = vld [vmem:[%s591 + $0x18] sm:$0xff]
    %v596 = vld [vmem:[%s591 + $0x20] sm:$0xff]
    %v597 = vld [vmem:[%s591 + $0x28] sm:$0xff]
    %v598 = vld [vmem:[%s591 + $0x30] sm:$0xff]
    %v599 = vld [vmem:[%s591 + $0x38] sm:$0xff]
    %v600 = vld [vmem:[%s591 + $0x40] sm:$0xff]
    %v601 = vld [vmem:[%s591 + $0x48] sm:$0xff]
    %v602 = vld [vmem:[%s591 + $0x50] sm:$0xff]
    %v603 = vld [vmem:[%s591 + $0x58] sm:$0xff]
    %v604 = vld [vmem:[%s591 + $0x60] sm:$0xff]
    %v605 = vld [vmem:[%s591 + $0x68] sm:$0xff]
    %v606 = vld [vmem:[%s591 + $0x70] sm:$0xff]
    %v607 = vld [vmem:[%s591 + $0x78] sm:$0xff]
    %v608 = vld [vmem:[%s591 + $0x80] sm:$0xff]
    %v609 = vld [vmem:[%s591 + $0x88] sm:$0xff]
    %v610 = vld [vmem:[%s591 + $0x90] sm:$0xff]
    %v611 = vld [vmem:[%s591 + $0x98] sm:$0xff]
    %v612 = vld [vmem:[%s591 + $0xa0] sm:$0xff]
    %v613 = vld [vmem:[%s591 + $0xa8] sm:$0xff]
    %v614 = vld [vmem:[%s591 + $0xb0] sm:$0xff]
    %v615 = vld [vmem:[%s591 + $0xb8] sm:$0xff]
    %v616 = vld [vmem:[%s591 + $0xc0] sm:$0xff]
    %v617 = vld [vmem:[%s591 + $0xc8] sm:$0xff]
    %v618 = vld [vmem:[%s591 + $0xd0] sm:$0xff]
    %v619 = vld [vmem:[%s591 + $0xd8] sm:$0xff]
    %v620 = vld [vmem:[%s591 + $0xe0] sm:$0xff]
    %v621 = vld [vmem:[%s591 + $0xe8] sm:$0xff]
    %v622 = vld [vmem:[%s591 + $0xf0] sm:$0xff]
    %v623 = vld [vmem:[%s591 + $0xf8] sm:$0xff]
    %624 = vmatprep.subr.mxu0 0.0
    %625 = vmatpush1.xpose.msra.mxu0 %v592
    %626 = vmatprep.subr.mxu0 0.0
    %627 = vmatpush1.xpose.msra.mxu0 %v593
    %628 = vmatprep.subr.mxu0 0.0
    %629 = vmatpush1.xpose.msra.mxu0 %v594
    %630 = vmatprep.subr.mxu0 0.0
    %631 = vmatpush1.xpose.msra.mxu0 %v595
    %632 = vmatprep.subr.mxu0 0.0
    %633 = vmatpush1.xpose.msra.mxu0 %v596
    %634 = vmatprep.subr.mxu0 0.0
    %635 = vmatpush1.xpose.msra.mxu0 %v597
    %636 = vmatprep.subr.mxu0 0.0
    %637 = vmatpush1.xpose.msra.mxu0 %v598
    %638 = vmatprep.subr.mxu0 0.0
    %639 = vmatpush1.xpose.msra.mxu0 %v599
    %640 = vmatprep.subr.mxu0 0.0
    %641 = vmatpush1.xpose.msra.mxu0 %v600
    %642 = vmatprep.subr.mxu0 0.0
    %643 = vmatpush1.xpose.msra.mxu0 %v601
    %644 = vmatprep.subr.mxu0 0.0
    %645 = vmatpush1.xpose.msra.mxu0 %v602
    %646 = vmatprep.subr.mxu0 0.0
    %647 = vmatpush1.xpose.msra.mxu0 %v603
    %648 = vmatprep.subr.mxu0 0.0
    %649 = vmatpush1.xpose.msra.mxu0 %v604
    %650 = vmatprep.subr.mxu0 0.0
    %651 = vmatpush1.xpose.msra.mxu0 %v605
    %652 = vmatprep.subr.mxu0 0.0
    %653 = vmatpush1.xpose.msra.mxu0 %v606
    %654 = vmatprep.subr.mxu0 0.0
    %655 = vmatpush1.xpose.msra.mxu0 %v607
    %656 = vmatprep.subr.mxu0 0.0
    %657 = vmatpush1.xpose.msra.mxu0 %v608
    %658 = vmatprep.subr.mxu0 0.0
    %659 = vmatpush1.xpose.msra.mxu0 %v609
    %660 = vmatprep.subr.mxu0 0.0
    %661 = vmatpush1.xpose.msra.mxu0 %v610
    %662 = vmatprep.subr.mxu0 0.0
    %663 = vmatpush1.xpose.msra.mxu0 %v611
    %664 = vmatprep.subr.mxu0 0.0
    %665 = vmatpush1.xpose.msra.mxu0 %v612
    %666 = vmatprep.subr.mxu0 0.0
    %667 = vmatpush1.xpose.msra.mxu0 %v613
    %668 = vmatprep.subr.mxu0 0.0
    %669 = vmatpush1.xpose.msra.mxu0 %v614
    %670 = vmatprep.subr.mxu0 0.0
    %671 = vmatpush1.xpose.msra.mxu0 %v615
    %672 = vmatprep.subr.mxu0 0.0
    %673 = vmatpush1.xpose.msra.mxu0 %v616
    %674 = vmatprep.subr.mxu0 0.0
    %675 = vmatpush1.xpose.msra.mxu0 %v617
    %676 = vmatprep.subr.mxu0 0.0
    %677 = vmatpush1.xpose.msra.mxu0 %v618
    %678 = vmatprep.subr.mxu0 0.0
    %679 = vmatpush1.xpose.msra.mxu0 %v619
    %680 = vmatprep.subr.mxu0 0.0
    %681 = vmatpush1.xpose.msra.mxu0 %v620
    %682 = vmatprep.subr.mxu0 0.0
    %683 = vmatpush1.xpose.msra.mxu0 %v621
    %684 = vmatprep.subr.mxu0 0.0
    %685 = vmatpush1.xpose.msra.mxu0 %v622
    %686 = vmatprep.subr.mxu0 0.0
    %687 = vmatpush1.xpose.msra.mxu0 %v623
    %688 = vmatprep.mubr.f32.mxu0 0.0
    %689 = vmatmul.mubr.f32.gmra.mrb[0].mxu0 %v589
    %v690 = vpop.f32.mrb[0].mxu0
    %v691 = vadd.f32 0.0, %v690
    %v692 = vpop.f32.mrb[0].mxu0
    %v693 = vadd.f32 0.0, %v692
    %694 = vmatprep.mubr.f32.mxu0 0.0
    %695 = vmatmul.mubr.f32.gmra.mrb[0].mxu0 %v590
    %v696 = vpop.f32.mrb[0].mxu0
    %v697 = vadd.f32 0.0, %v696
    %v698 = vpop.f32.mrb[0].mxu0
    %v699 = vadd.f32 0.0, %v698
    %700 = vdwg.mxu0
    %s701 = scalar_lea.vmem %s2, 4
    %v702 = vld [vmem:[%s701] sm:$0x3]
    %v703 = vmul.f32 %v691, 2.0
    %v704 = vmul.f32 %v693, 2.0
    %v705 = vmul.f32 %v697, 2.0
    %v706 = vmul.f32 %v699, 2.0
    %v708 = vlaneseq
    %v709 = vshrl.u32 %v708, 7
    %v710 = vsub.s32 0, %v709
    %v711 = vrot.slane %v702, %v710
    %v712 = vlaneseq
    %v713 = vshrl.u32 %v712, 7
    %v714 = vsub.s32 1, %v713
    %v715 = vrot.slane %v702, %v714
    %v718 = vsub.f32 %v711, %v703
    %v719 = vsub.f32 %v715, %v704
    %v720 = vsub.f32 %v711, %v705
    %v721 = vsub.f32 %v715, %v706
    %v722 = vmin.f32 %v718, %v719
    %723 = vmin.xlane.f32.xlu0 %v722
    %v724 = vpop.xlane.xlu0 %723
    %v725 = vmin.f32 %v720, %v721
    %726 = vmin.xlane.f32.xlu0 %v725
    %v727 = vpop.xlane.xlu0 %726
    %vm728 = vcmp.le.f32.partialorder %v718, %v724
    %vm729 = vcmp.le.f32.partialorder %v719, %v724
    %vm730 = vcmp.le.f32.partialorder %v720, %v727
    %vm731 = vcmp.le.f32.partialorder %v721, %v727
    %v732 = vsel %vm728, %v190, 256
    %v733 = vsel %vm729, %v191, 256
    %v734 = vsel %vm730, %v190, 256
    %v735 = vsel %vm731, %v191, 256
    %vm736 = vcmp.lt.s32.totalorder %v732, %v733
    %v737 = vsel %vm736, %v732, %v733
    %v738 = vand.u32 %v737, 65535
    %v739 = vshra.s32 %v737, 16
    %v740 = vcvt.s32.f32 %v738
    %v741 = vcvt.s32.f32 %v739
    %742 = vmin.xlane.f32.xlu0 %v741
    %v743 = vpop.xlane.xlu0 %742
    %vm744 = vcmp.eq.f32.partialorder %v741, %v743
    %v745 = vsel %vm744, %v740, inf
    %746 = vmin.xlane.f32.xlu0 %v745
    %v747 = vpop.xlane.xlu0 %746
    %v748 = vcvt.f32.s32 %v747
    %v749 = vcvt.f32.s32 %v743
    %v750 = vshll.u32 %v749, 16
    %v751 = vadd.s32 %v750, %v748
    %vm752 = vcmp.lt.s32.totalorder %v734, %v735
    %v753 = vsel %vm752, %v734, %v735
    %v754 = vand.u32 %v753, 65535
    %v755 = vshra.s32 %v753, 16
    %v756 = vcvt.s32.f32 %v754
    %v757 = vcvt.s32.f32 %v755
    %758 = vmin.xlane.f32.xlu0 %v757
    %v759 = vpop.xlane.xlu0 %758
    %vm760 = vcmp.eq.f32.partialorder %v757, %v759
    %v761 = vsel %vm760, %v756, inf
    %762 = vmin.xlane.f32.xlu0 %v761
    %v763 = vpop.xlane.xlu0 %762
    %v764 = vcvt.f32.s32 %v763
    %v765 = vcvt.f32.s32 %v759
    %v766 = vshll.u32 %v765, 16
    %v767 = vadd.s32 %v766, %v764
    %vm768 = vcmp.eq.s32.totalorder %v190, %v751
    %vm769 = vcmp.eq.s32.totalorder %v191, %v751
    %vm770 = vcmp.eq.s32.totalorder %v190, %v767
    %vm771 = vcmp.eq.s32.totalorder %v191, %v767
    %v772 = vsel %vm768, 1, 0
    %v773 = vsel %vm769, 1, 0
    %v774 = vsel %vm770, 1, 0
    %v775 = vsel %vm771, 1, 0
    %v776 = vcvt.s32.f32 %v772
    %v777 = vcvt.s32.f32 %v773
    %v778 = vcvt.s32.f32 %v774
    %v779 = vcvt.s32.f32 %v775
    %780 = vmatprep.subr.mxu0 0.0
    %781 = vmatpush1.msra.mxu0 %v592
    %782 = vmatprep.subr.mxu0 0.0
    %783 = vmatpush1.msra.mxu0 %v593
    %784 = vmatprep.subr.mxu0 0.0
    %785 = vmatpush1.msra.mxu0 %v594
    %786 = vmatprep.subr.mxu0 0.0
    %787 = vmatpush1.msra.mxu0 %v595
    %788 = vmatprep.subr.mxu0 0.0
    %789 = vmatpush1.msra.mxu0 %v596
    %790 = vmatprep.subr.mxu0 0.0
    %791 = vmatpush1.msra.mxu0 %v597
    %792 = vmatprep.subr.mxu0 0.0
    %793 = vmatpush1.msra.mxu0 %v598
    %794 = vmatprep.subr.mxu0 0.0
    %795 = vmatpush1.msra.mxu0 %v599
    %796 = vmatprep.subr.mxu0 0.0
    %797 = vmatpush1.msra.mxu0 %v600
    %798 = vmatprep.subr.mxu0 0.0
    %799 = vmatpush1.msra.mxu0 %v601
    %800 = vmatprep.subr.mxu0 0.0
    %801 = vmatpush1.msra.mxu0 %v602
    %802 = vmatprep.subr.mxu0 0.0
    %803 = vmatpush1.msra.mxu0 %v603
    %804 = vmatprep.subr.mxu0 0.0
    %805 = vmatpush1.msra.mxu0 %v604
    %806 = vmatprep.subr.mxu0 0.0
    %807 = vmatpush1.msra.mxu0 %v605
    %808 = vmatprep.subr.mxu0 0.0
    %809 = vmatpush1.msra.mxu0 %v606
    %810 = vmatprep.subr.mxu0 0.0
    %811 = vmatpush1.msra.mxu0 %v607
    %812 = vmatprep.subr.mxu0 0.0
    %813 = vmatpush1.msra.mxu0 %v608
    %814 = vmatprep.subr.mxu0 0.0
    %815 = vmatpush1.msra.mxu0 %v609
    %816 = vmatprep.subr.mxu0 0.0
    %817 = vmatpush1.msra.mxu0 %v610
    %818 = vmatprep.subr.mxu0 0.0
    %819 = vmatpush1.msra.mxu0 %v611
    %820 = vmatprep.subr.mxu0 0.0
    %821 = vmatpush1.msra.mxu0 %v612
    %822 = vmatprep.subr.mxu0 0.0
    %823 = vmatpush1.msra.mxu0 %v613
    %824 = vmatprep.subr.mxu0 0.0
    %825 = vmatpush1.msra.mxu0 %v614
    %826 = vmatprep.subr.mxu0 0.0
    %827 = vmatpush1.msra.mxu0 %v615
    %828 = vmatprep.subr.mxu0 0.0
    %829 = vmatpush1.msra.mxu0 %v616
    %830 = vmatprep.subr.mxu0 0.0
    %831 = vmatpush1.msra.mxu0 %v617
    %832 = vmatprep.subr.mxu0 0.0
    %833 = vmatpush1.msra.mxu0 %v618
    %834 = vmatprep.subr.mxu0 0.0
    %835 = vmatpush1.msra.mxu0 %v619
    %836 = vmatprep.subr.mxu0 0.0
    %837 = vmatpush1.msra.mxu0 %v620
    %838 = vmatprep.subr.mxu0 0.0
    %839 = vmatpush1.msra.mxu0 %v621
    %840 = vmatprep.subr.mxu0 0.0
    %841 = vmatpush1.msra.mxu0 %v622
    %842 = vmatprep.subr.mxu0 0.0
    %843 = vmatpush1.msra.mxu0 %v623
    %844 = vmatprep.mubr.f32.mxu0 %v777
    %845 = vmatmul.mubr.f32.gmra.mrb[0].mxu0 %v776
    %v846 = vpop.f32.mrb[0].mxu0
    %v847 = vadd.f32 0.0, %v846
    %v848 = vpop.f32.mrb[0].mxu0
    %849 = vmatprep.mubr.f32.mxu0 %v779
    %850 = vmatmul.mubr.f32.gmra.mrb[0].mxu0 %v778
    %v851 = vpop.f32.mrb[0].mxu0
    %v852 = vadd.f32 0.0, %v851
    %v853 = vpop.f32.mrb[0].mxu0
    %854 = vdwg.mxu0
    %v855 = vadd.f32 %v587, %v847
    %v856 = vadd.f32 %v588, %v852
    %v857 = vsub.f32 %v589, %v847
    %v858 = vsub.f32 %v590, %v852
    %s859 = scalar_lea.vmem [#allocation2], 768
    %v860 = vld [vmem:[%s859] sm:$0xff]
    %v861 = vld [vmem:[%s859 + $0x8] sm:$0xff]
    %v862 = vld [vmem:[%s859 + $0x10] sm:$0xff]
    %v863 = vld [vmem:[%s859 + $0x18] sm:$0xff]
    %v864 = vld [vmem:[%s859 + $0x20] sm:$0xff]
    %v865 = vld [vmem:[%s859 + $0x28] sm:$0xff]
    %v866 = vld [vmem:[%s859 + $0x30] sm:$0xff]
    %v867 = vld [vmem:[%s859 + $0x38] sm:$0xff]
    %v868 = vld [vmem:[%s859 + $0x40] sm:$0xff]
    %v869 = vld [vmem:[%s859 + $0x48] sm:$0xff]
    %v870 = vld [vmem:[%s859 + $0x50] sm:$0xff]
    %v871 = vld [vmem:[%s859 + $0x58] sm:$0xff]
    %v872 = vld [vmem:[%s859 + $0x60] sm:$0xff]
    %v873 = vld [vmem:[%s859 + $0x68] sm:$0xff]
    %v874 = vld [vmem:[%s859 + $0x70] sm:$0xff]
    %v875 = vld [vmem:[%s859 + $0x78] sm:$0xff]
    %v876 = vld [vmem:[%s859 + $0x80] sm:$0xff]
    %v877 = vld [vmem:[%s859 + $0x88] sm:$0xff]
    %v878 = vld [vmem:[%s859 + $0x90] sm:$0xff]
    %v879 = vld [vmem:[%s859 + $0x98] sm:$0xff]
    %v880 = vld [vmem:[%s859 + $0xa0] sm:$0xff]
    %v881 = vld [vmem:[%s859 + $0xa8] sm:$0xff]
    %v882 = vld [vmem:[%s859 + $0xb0] sm:$0xff]
    %v883 = vld [vmem:[%s859 + $0xb8] sm:$0xff]
    %v884 = vld [vmem:[%s859 + $0xc0] sm:$0xff]
    %v885 = vld [vmem:[%s859 + $0xc8] sm:$0xff]
    %v886 = vld [vmem:[%s859 + $0xd0] sm:$0xff]
    %v887 = vld [vmem:[%s859 + $0xd8] sm:$0xff]
    %v888 = vld [vmem:[%s859 + $0xe0] sm:$0xff]
    %v889 = vld [vmem:[%s859 + $0xe8] sm:$0xff]
    %v890 = vld [vmem:[%s859 + $0xf0] sm:$0xff]
    %v891 = vld [vmem:[%s859 + $0xf8] sm:$0xff]
    %892 = vmatprep.subr.mxu0 0.0
    %893 = vmatpush1.xpose.msra.mxu0 %v860
    %894 = vmatprep.subr.mxu0 0.0
    %895 = vmatpush1.xpose.msra.mxu0 %v861
    %896 = vmatprep.subr.mxu0 0.0
    %897 = vmatpush1.xpose.msra.mxu0 %v862
    %898 = vmatprep.subr.mxu0 0.0
    %899 = vmatpush1.xpose.msra.mxu0 %v863
    %900 = vmatprep.subr.mxu0 0.0
    %901 = vmatpush1.xpose.msra.mxu0 %v864
    %902 = vmatprep.subr.mxu0 0.0
    %903 = vmatpush1.xpose.msra.mxu0 %v865
    %904 = vmatprep.subr.mxu0 0.0
    %905 = vmatpush1.xpose.msra.mxu0 %v866
    %906 = vmatprep.subr.mxu0 0.0
    %907 = vmatpush1.xpose.msra.mxu0 %v867
    %908 = vmatprep.subr.mxu0 0.0
    %909 = vmatpush1.xpose.msra.mxu0 %v868
    %910 = vmatprep.subr.mxu0 0.0
    %911 = vmatpush1.xpose.msra.mxu0 %v869
    %912 = vmatprep.subr.mxu0 0.0
    %913 = vmatpush1.xpose.msra.mxu0 %v870
    %914 = vmatprep.subr.mxu0 0.0
    %915 = vmatpush1.xpose.msra.mxu0 %v871
    %916 = vmatprep.subr.mxu0 0.0
    %917 = vmatpush1.xpose.msra.mxu0 %v872
    %918 = vmatprep.subr.mxu0 0.0
    %919 = vmatpush1.xpose.msra.mxu0 %v873
    %920 = vmatprep.subr.mxu0 0.0
    %921 = vmatpush1.xpose.msra.mxu0 %v874
    %922 = vmatprep.subr.mxu0 0.0
    %923 = vmatpush1.xpose.msra.mxu0 %v875
    %924 = vmatprep.subr.mxu0 0.0
    %925 = vmatpush1.xpose.msra.mxu0 %v876
    %926 = vmatprep.subr.mxu0 0.0
    %927 = vmatpush1.xpose.msra.mxu0 %v877
    %928 = vmatprep.subr.mxu0 0.0
    %929 = vmatpush1.xpose.msra.mxu0 %v878
    %930 = vmatprep.subr.mxu0 0.0
    %931 = vmatpush1.xpose.msra.mxu0 %v879
    %932 = vmatprep.subr.mxu0 0.0
    %933 = vmatpush1.xpose.msra.mxu0 %v880
    %934 = vmatprep.subr.mxu0 0.0
    %935 = vmatpush1.xpose.msra.mxu0 %v881
    %936 = vmatprep.subr.mxu0 0.0
    %937 = vmatpush1.xpose.msra.mxu0 %v882
    %938 = vmatprep.subr.mxu0 0.0
    %939 = vmatpush1.xpose.msra.mxu0 %v883
    %940 = vmatprep.subr.mxu0 0.0
    %941 = vmatpush1.xpose.msra.mxu0 %v884
    %942 = vmatprep.subr.mxu0 0.0
    %943 = vmatpush1.xpose.msra.mxu0 %v885
    %944 = vmatprep.subr.mxu0 0.0
    %945 = vmatpush1.xpose.msra.mxu0 %v886
    %946 = vmatprep.subr.mxu0 0.0
    %947 = vmatpush1.xpose.msra.mxu0 %v887
    %948 = vmatprep.subr.mxu0 0.0
    %949 = vmatpush1.xpose.msra.mxu0 %v888
    %950 = vmatprep.subr.mxu0 0.0
    %951 = vmatpush1.xpose.msra.mxu0 %v889
    %952 = vmatprep.subr.mxu0 0.0
    %953 = vmatpush1.xpose.msra.mxu0 %v890
    %954 = vmatprep.subr.mxu0 0.0
    %955 = vmatpush1.xpose.msra.mxu0 %v891
    %956 = vmatprep.mubr.f32.mxu0 0.0
    %957 = vmatmul.mubr.f32.gmra.mrb[0].mxu0 %v857
    %v958 = vpop.f32.mrb[0].mxu0
    %v959 = vadd.f32 0.0, %v958
    %v960 = vpop.f32.mrb[0].mxu0
    %v961 = vadd.f32 0.0, %v960
    %962 = vmatprep.mubr.f32.mxu0 0.0
    %963 = vmatmul.mubr.f32.gmra.mrb[0].mxu0 %v858
    %v964 = vpop.f32.mrb[0].mxu0
    %v965 = vadd.f32 0.0, %v964
    %v966 = vpop.f32.mrb[0].mxu0
    %v967 = vadd.f32 0.0, %v966
    %968 = vdwg.mxu0
    %s969 = scalar_lea.vmem %s2, 6
    %v970 = vld [vmem:[%s969] sm:$0x3]
    %v971 = vmul.f32 %v959, 2.0
    %v972 = vmul.f32 %v961, 2.0
    %v973 = vmul.f32 %v965, 2.0
    %v974 = vmul.f32 %v967, 2.0
    %v976 = vlaneseq
    %v977 = vshrl.u32 %v976, 7
    %v978 = vsub.s32 0, %v977
    %v979 = vrot.slane %v970, %v978
    %v980 = vlaneseq
    %v981 = vshrl.u32 %v980, 7
    %v982 = vsub.s32 1, %v981
    %v983 = vrot.slane %v970, %v982
    %v986 = vsub.f32 %v979, %v971
    %v987 = vsub.f32 %v983, %v972
    %v988 = vsub.f32 %v979, %v973
    %v989 = vsub.f32 %v983, %v974
    %v990 = vmin.f32 %v986, %v987
    %991 = vmin.xlane.f32.xlu0 %v990
    %v992 = vpop.xlane.xlu0 %991
    %v993 = vmin.f32 %v988, %v989
    %994 = vmin.xlane.f32.xlu0 %v993
    %v995 = vpop.xlane.xlu0 %994
    %vm996 = vcmp.le.f32.partialorder %v986, %v992
    %vm997 = vcmp.le.f32.partialorder %v987, %v992
    %vm998 = vcmp.le.f32.partialorder %v988, %v995
    %vm999 = vcmp.le.f32.partialorder %v989, %v995
    %v1000 = vsel %vm996, %v190, 256
    %v1001 = vsel %vm997, %v191, 256
    %v1002 = vsel %vm998, %v190, 256
    %v1003 = vsel %vm999, %v191, 256
    %vm1004 = vcmp.lt.s32.totalorder %v1000, %v1001
    %v1005 = vsel %vm1004, %v1000, %v1001
    %v1006 = vand.u32 %v1005, 65535
    %v1007 = vshra.s32 %v1005, 16
    %v1008 = vcvt.s32.f32 %v1006
    %v1009 = vcvt.s32.f32 %v1007
    %1010 = vmin.xlane.f32.xlu0 %v1009
    %v1011 = vpop.xlane.xlu0 %1010
    %vm1012 = vcmp.eq.f32.partialorder %v1009, %v1011
    %v1013 = vsel %vm1012, %v1008, inf
    %1014 = vmin.xlane.f32.xlu0 %v1013
    %v1015 = vpop.xlane.xlu0 %1014
    %v1016 = vcvt.f32.s32 %v1015
    %v1017 = vcvt.f32.s32 %v1011
    %v1018 = vshll.u32 %v1017, 16
    %v1019 = vadd.s32 %v1018, %v1016
    %vm1020 = vcmp.lt.s32.totalorder %v1002, %v1003
    %v1021 = vsel %vm1020, %v1002, %v1003
    %v1022 = vand.u32 %v1021, 65535
    %v1023 = vshra.s32 %v1021, 16
    %v1024 = vcvt.s32.f32 %v1022
    %v1025 = vcvt.s32.f32 %v1023
    %1026 = vmin.xlane.f32.xlu0 %v1025
    %v1027 = vpop.xlane.xlu0 %1026
    %vm1028 = vcmp.eq.f32.partialorder %v1025, %v1027
    %v1029 = vsel %vm1028, %v1024, inf
    %1030 = vmin.xlane.f32.xlu0 %v1029
    %v1031 = vpop.xlane.xlu0 %1030
    %v1032 = vcvt.f32.s32 %v1031
    %v1033 = vcvt.f32.s32 %v1027
    %v1034 = vshll.u32 %v1033, 16
    %v1035 = vadd.s32 %v1034, %v1032
    %vm1036 = vcmp.eq.s32.totalorder %v190, %v1019
    %vm1037 = vcmp.eq.s32.totalorder %v191, %v1019
    %vm1038 = vcmp.eq.s32.totalorder %v190, %v1035
    %vm1039 = vcmp.eq.s32.totalorder %v191, %v1035
    %v1040 = vsel %vm1036, 1, 0
    %v1041 = vsel %vm1037, 1, 0
    %v1042 = vsel %vm1038, 1, 0
    %v1043 = vsel %vm1039, 1, 0
    %v1044 = vcvt.s32.f32 %v1040
    %v1045 = vcvt.s32.f32 %v1041
    %v1046 = vcvt.s32.f32 %v1042
    %v1047 = vcvt.s32.f32 %v1043
    %1048 = vmatprep.subr.mxu0 0.0
    %1049 = vmatpush1.msra.mxu0 %v860
    %1050 = vmatprep.subr.mxu0 0.0
    %1051 = vmatpush1.msra.mxu0 %v861
    %1052 = vmatprep.subr.mxu0 0.0
    %1053 = vmatpush1.msra.mxu0 %v862
    %1054 = vmatprep.subr.mxu0 0.0
    %1055 = vmatpush1.msra.mxu0 %v863
    %1056 = vmatprep.subr.mxu0 0.0
    %1057 = vmatpush1.msra.mxu0 %v864
    %1058 = vmatprep.subr.mxu0 0.0
    %1059 = vmatpush1.msra.mxu0 %v865
    %1060 = vmatprep.subr.mxu0 0.0
    %1061 = vmatpush1.msra.mxu0 %v866
    %1062 = vmatprep.subr.mxu0 0.0
    %1063 = vmatpush1.msra.mxu0 %v867
    %1064 = vmatprep.subr.mxu0 0.0
    %1065 = vmatpush1.msra.mxu0 %v868
    %1066 = vmatprep.subr.mxu0 0.0
    %1067 = vmatpush1.msra.mxu0 %v869
    %1068 = vmatprep.subr.mxu0 0.0
    %1069 = vmatpush1.msra.mxu0 %v870
    %1070 = vmatprep.subr.mxu0 0.0
    %1071 = vmatpush1.msra.mxu0 %v871
    %1072 = vmatprep.subr.mxu0 0.0
    %1073 = vmatpush1.msra.mxu0 %v872
    %1074 = vmatprep.subr.mxu0 0.0
    %1075 = vmatpush1.msra.mxu0 %v873
    %1076 = vmatprep.subr.mxu0 0.0
    %1077 = vmatpush1.msra.mxu0 %v874
    %1078 = vmatprep.subr.mxu0 0.0
    %1079 = vmatpush1.msra.mxu0 %v875
    %1080 = vmatprep.subr.mxu0 0.0
    %1081 = vmatpush1.msra.mxu0 %v876
    %1082 = vmatprep.subr.mxu0 0.0
    %1083 = vmatpush1.msra.mxu0 %v877
    %1084 = vmatprep.subr.mxu0 0.0
    %1085 = vmatpush1.msra.mxu0 %v878
    %1086 = vmatprep.subr.mxu0 0.0
    %1087 = vmatpush1.msra.mxu0 %v879
    %1088 = vmatprep.subr.mxu0 0.0
    %1089 = vmatpush1.msra.mxu0 %v880
    %1090 = vmatprep.subr.mxu0 0.0
    %1091 = vmatpush1.msra.mxu0 %v881
    %1092 = vmatprep.subr.mxu0 0.0
    %1093 = vmatpush1.msra.mxu0 %v882
    %1094 = vmatprep.subr.mxu0 0.0
    %1095 = vmatpush1.msra.mxu0 %v883
    %1096 = vmatprep.subr.mxu0 0.0
    %1097 = vmatpush1.msra.mxu0 %v884
    %1098 = vmatprep.subr.mxu0 0.0
    %1099 = vmatpush1.msra.mxu0 %v885
    %1100 = vmatprep.subr.mxu0 0.0
    %1101 = vmatpush1.msra.mxu0 %v886
    %1102 = vmatprep.subr.mxu0 0.0
    %1103 = vmatpush1.msra.mxu0 %v887
    %1104 = vmatprep.subr.mxu0 0.0
    %1105 = vmatpush1.msra.mxu0 %v888
    %1106 = vmatprep.subr.mxu0 0.0
    %1107 = vmatpush1.msra.mxu0 %v889
    %1108 = vmatprep.subr.mxu0 0.0
    %1109 = vmatpush1.msra.mxu0 %v890
    %1110 = vmatprep.subr.mxu0 0.0
    %1111 = vmatpush1.msra.mxu0 %v891
    %1112 = vmatprep.mubr.f32.mxu0 %v1045
    %1113 = vmatmul.mubr.f32.gmra.mrb[0].mxu0 %v1044
    %v1114 = vpop.f32.mrb[0].mxu0
    %v1115 = vadd.f32 0.0, %v1114
    %v1116 = vpop.f32.mrb[0].mxu0
    %1117 = vmatprep.mubr.f32.mxu0 %v1047
    %1118 = vmatmul.mubr.f32.gmra.mrb[0].mxu0 %v1046
    %v1119 = vpop.f32.mrb[0].mxu0
    %v1120 = vadd.f32 0.0, %v1119
    %v1121 = vpop.f32.mrb[0].mxu0
    %1122 = vdwg.mxu0
    %v1123 = vadd.f32 %v855, %v1115
    %v1124 = vadd.f32 %v856, %v1120
    %v1125 = vld [vmem:[#allocation5] sm:$0xff]
    %v1126 = vld [vmem:[#allocation5 + $0x8] sm:$0xff]
    %v1127 = vld [vmem:[#allocation5 + $0x10] sm:$0xff]
    %v1128 = vld [vmem:[#allocation5 + $0x18] sm:$0xff]
    %v1129 = vld [vmem:[#allocation5 + $0x20] sm:$0xff]
    %v1130 = vld [vmem:[#allocation5 + $0x28] sm:$0xff]
    %v1131 = vld [vmem:[#allocation5 + $0x30] sm:$0xff]
    %v1132 = vld [vmem:[#allocation5 + $0x38] sm:$0xff]
    %v1133 = vld [vmem:[#allocation5 + $0x40] sm:$0xff]
    %v1134 = vld [vmem:[#allocation5 + $0x48] sm:$0xff]
    %v1135 = vld [vmem:[#allocation5 + $0x50] sm:$0xff]
    %v1136 = vld [vmem:[#allocation5 + $0x58] sm:$0xff]
    %v1137 = vld [vmem:[#allocation5 + $0x60] sm:$0xff]
    %v1138 = vld [vmem:[#allocation5 + $0x68] sm:$0xff]
    %v1139 = vld [vmem:[#allocation5 + $0x70] sm:$0xff]
    %v1140 = vld [vmem:[#allocation5 + $0x78] sm:$0xff]
    %v1141 = vld [vmem:[#allocation5 + $0x80] sm:$0xff]
    %v1142 = vld [vmem:[#allocation5 + $0x88] sm:$0xff]
    %v1143 = vld [vmem:[#allocation5 + $0x90] sm:$0xff]
    %v1144 = vld [vmem:[#allocation5 + $0x98] sm:$0xff]
    %v1145 = vld [vmem:[#allocation5 + $0xa0] sm:$0xff]
    %v1146 = vld [vmem:[#allocation5 + $0xa8] sm:$0xff]
    %v1147 = vld [vmem:[#allocation5 + $0xb0] sm:$0xff]
    %v1148 = vld [vmem:[#allocation5 + $0xb8] sm:$0xff]
    %v1149 = vld [vmem:[#allocation5 + $0xc0] sm:$0xff]
    %v1150 = vld [vmem:[#allocation5 + $0xc8] sm:$0xff]
    %v1151 = vld [vmem:[#allocation5 + $0xd0] sm:$0xff]
    %v1152 = vld [vmem:[#allocation5 + $0xd8] sm:$0xff]
    %v1153 = vld [vmem:[#allocation5 + $0xe0] sm:$0xff]
    %v1154 = vld [vmem:[#allocation5 + $0xe8] sm:$0xff]
    %v1155 = vld [vmem:[#allocation5 + $0xf0] sm:$0xff]
    %v1156 = vld [vmem:[#allocation5 + $0xf8] sm:$0xff]
    %v1157 = vld [vmem:[%s4] sm:$0x3]
    %v1159 = vlaneseq
    %v1160 = vshrl.u32 %v1159, 7
    %v1161 = vsub.s32 0, %v1160
    %v1162 = vrot.slane %v1157, %v1161
    %v1163 = vlaneseq
    %v1164 = vshrl.u32 %v1163, 7
    %v1165 = vsub.s32 1, %v1164
    %v1166 = vrot.slane %v1157, %v1165
    %1169 = vmatprep.subr.mxu0 %v1126
    %1170 = vmatpush1.msra.mxu0 %v1125
    %1171 = vmatprep.subr.mxu0 %v1128
    %1172 = vmatpush1.msra.mxu0 %v1127
    %1173 = vmatprep.subr.mxu0 %v1130
    %1174 = vmatpush1.msra.mxu0 %v1129
    %1175 = vmatprep.subr.mxu0 %v1132
    %1176 = vmatpush1.msra.mxu0 %v1131
    %1177 = vmatprep.subr.mxu0 %v1134
    %1178 = vmatpush1.msra.mxu0 %v1133
    %1179 = vmatprep.subr.mxu0 %v1136
    %1180 = vmatpush1.msra.mxu0 %v1135
    %1181 = vmatprep.subr.mxu0 %v1138
    %1182 = vmatpush1.msra.mxu0 %v1137
    %1183 = vmatprep.subr.mxu0 %v1140
    %1184 = vmatpush1.msra.mxu0 %v1139
    %1185 = vmatprep.subr.mxu0 %v1142
    %1186 = vmatpush1.msra.mxu0 %v1141
    %1187 = vmatprep.subr.mxu0 %v1144
    %1188 = vmatpush1.msra.mxu0 %v1143
    %1189 = vmatprep.subr.mxu0 %v1146
    %1190 = vmatpush1.msra.mxu0 %v1145
    %1191 = vmatprep.subr.mxu0 %v1148
    %1192 = vmatpush1.msra.mxu0 %v1147
    %1193 = vmatprep.subr.mxu0 %v1150
    %1194 = vmatpush1.msra.mxu0 %v1149
    %1195 = vmatprep.subr.mxu0 %v1152
    %1196 = vmatpush1.msra.mxu0 %v1151
    %1197 = vmatprep.subr.mxu0 %v1154
    %1198 = vmatpush1.msra.mxu0 %v1153
    %1199 = vmatprep.subr.mxu0 %v1156
    %1200 = vmatpush1.msra.mxu0 %v1155
    %1201 = vmatprep.subr.mxu0 0.0
    %1202 = vmatpush1.msra.mxu0 0.0
    %1203 = vmatprep.subr.mxu0 0.0
    %1204 = vmatpush1.msra.mxu0 0.0
    %1205 = vmatprep.subr.mxu0 0.0
    %1206 = vmatpush1.msra.mxu0 0.0
    %1207 = vmatprep.subr.mxu0 0.0
    %1208 = vmatpush1.msra.mxu0 0.0
    %1209 = vmatprep.subr.mxu0 0.0
    %1210 = vmatpush1.msra.mxu0 0.0
    %1211 = vmatprep.subr.mxu0 0.0
    %1212 = vmatpush1.msra.mxu0 0.0
    %1213 = vmatprep.subr.mxu0 0.0
    %1214 = vmatpush1.msra.mxu0 0.0
    %1215 = vmatprep.subr.mxu0 0.0
    %1216 = vmatpush1.msra.mxu0 0.0
    %1217 = vmatprep.subr.mxu0 0.0
    %1218 = vmatpush1.msra.mxu0 0.0
    %1219 = vmatprep.subr.mxu0 0.0
    %1220 = vmatpush1.msra.mxu0 0.0
    %1221 = vmatprep.subr.mxu0 0.0
    %1222 = vmatpush1.msra.mxu0 0.0
    %1223 = vmatprep.subr.mxu0 0.0
    %1224 = vmatpush1.msra.mxu0 0.0
    %1225 = vmatprep.subr.mxu0 0.0
    %1226 = vmatpush1.msra.mxu0 0.0
    %1227 = vmatprep.subr.mxu0 0.0
    %1228 = vmatpush1.msra.mxu0 0.0
    %1229 = vmatprep.subr.mxu0 0.0
    %1230 = vmatpush1.msra.mxu0 0.0
    %1231 = vmatprep.subr.mxu0 0.0
    %1232 = vmatpush1.msra.mxu0 0.0
    %1233 = vmatprep.mubr.f32.mxu0 0.0
    %1234 = vmatmul.mubr.f32.gmra.mrb[0].mxu0 %v1123
    %v1235 = vpop.f32.mrb[0].mxu0
    %v1236 = vadd.f32 %v1162, %v1235
    %v1237 = vpop.f32.mrb[0].mxu0
    %v1238 = vadd.f32 %v1166, %v1237
    %1239 = vmatprep.mubr.f32.mxu0 0.0
    %1240 = vmatmul.mubr.f32.gmra.mrb[0].mxu0 %v1124
    %v1241 = vpop.f32.mrb[0].mxu0
    %v1242 = vadd.f32 %v1162, %v1241
    %v1243 = vpop.f32.mrb[0].mxu0
    %v1244 = vadd.f32 %v1166, %v1243
    %1245 = vdwg.mxu0
    %v1246 = vld [vmem:[%s5] sm:$0xff]
    %v1247 = vld [vmem:[%s5 + $0x8] sm:$0xff]
    %1249 = vset.pattern.permute.xlu0 0
    %1250 = vperm.xlu0 %1249, %v1246
    %v1251 = vpop.permute.xlu0 %1250
    %1254 = vset.pattern.permute.xlu0 0
    %1255 = vperm.xlu0 %1254, %v1247
    %v1256 = vpop.permute.xlu0 %1255
    %v1258 = vmul.f32 %v1236, %v1251
    %v1259 = vmul.f32 %v1238, %v1251
    %v1260 = vmul.f32 %v1242, %v1256
    %v1261 = vmul.f32 %v1244, %v1256
    %1262 = vst [vmem:[#allocation7] sm:$0xff] %v1258
    %1263 = vst [vmem:[#allocation7 + $0x8] sm:$0xff] %v1259
    %1264 = vst [vmem:[#allocation7 + $0x10] sm:$0xff] %v1260
    %1265 = vst [vmem:[#allocation7 + $0x18] sm:$0xff] %v1261
    // Predicated region
    $region34: #{tpu_custom_call.1} parent=1 // pred_check
      _
    $region35: #{tpu_custom_call.1} parent=1 // pred_check_branch
      %1267 = sbr.rel (0) target = $region37
    $region36: #{tpu_custom_call.1} parent=1 // pred_region
      %s1269 = ssub.s32 512, 512
      %1270 = vsyncadd [#allocation4], %s1269
      %s1271 = sshll.u32 [#allocation7], 4
      %s1272 = int_to_ptr.vmem [resolvable:$true] %s1271
      %1277 = dma.vmem_to_hbm [thread:$0]  %s1272, 512, %s6, [#allocation4], 256, 256, 16
    $region37: #{tpu_custom_call.1} parent=1 // pred_fallthru
      _
    // Predicated region
    $region38: #{tpu_custom_call.1} parent=1 // pred_check
      _
    $region39: #{tpu_custom_call.1} parent=1 // pred_check_branch
      %1279 = sbr.rel (0) target = $region41
    $region40: #{tpu_custom_call.1} parent=1 // pred_region
      %1280 = dma.done [#allocation4], 512
    $region41: #{tpu_custom_call.1} parent=1 // pred_fallthru
      _
    %1281 = vsyncpa [#allocation3], 1
    %1282 = vsyncpa [#allocation6], 1
    %1283 = vsyncpa [#allocation4], 1

</llo_original>
